<compile_context>
chip_gen: v5e
topology: v5e:2x2
jax: 0.10.0
libtpu: 0.0.40
codegen_flags: <defaults>
</compile_context>

<pallas_src>
import jax
import jax.numpy as jnp
from jax import lax
from jax.experimental import pallas as pl
from jax.experimental.pallas import tpu as pltpu


# -----------------------------------------------------------------------------
# Fused kernel factory: LSTM recurrence + fc + CRF viterbi forward + backtrack.
# All operands are whole-array VMEM residents (no grid, no per-step DMA).
# -----------------------------------------------------------------------------
def make_lstm_crf_kernel(B, T, E, H, L, TP):
    rL = E + H + 1  # first row of the L-wide constants inside the packed slab

    def kernel(x_ref,      # (T*B, E)  f32, time-major flattened embeddings
               lens_ref,   # (B, 1)    int32 sequence lengths
               slab_ref,   # (E+2H+L+3, 4H) f32 packed weights/constants (lane-dense)
               preds_ref): # out: (B, TP) int32 (lane-dense; wrapper slices [:, :T])
        # ---- unpack the packed constants slab (static slices; single loads) ----
        wih = slab_ref[0:E, :]                                  # (E, 4H), g-quarter *2
        whh = slab_ref[E:E + H, :]                              # (H, 4H), g-quarter *2
        b = slab_ref[E + H:E + H + 1, :]                        # (1, 4H), g-quarter *2
        wfc = slab_ref[rL:rL + H, 0:L]                          # (H, L)   BN-folded fc
        bfc = slab_ref[rL + H:rL + H + 1, 0:L]                  # (1, L)
        trans = slab_ref[rL + H + 1:rL + H + 1 + L, 0:L]        # (L, L)
        stop = slab_ref[rL + H + 1 + L:rL + H + 2 + L, 0:L]     # (1, L) = transitions[stop]

        # ---- hoisted input projection: one MXU matmul for every timestep at once ----
        gx = jnp.dot(x_ref[...], wih, preferred_element_type=jnp.float32) + b  # (T*B, 4H)

        # ---- LSTM recurrence (T small & static -> fully unrolled; values stay in vregs) ----
        h = jnp.zeros((B, H), jnp.float32)
        c = jnp.zeros((B, H), jnp.float32)
        h_steps = []
        for t in range(T):
            gates = gx[t * B:(t + 1) * B, :] + jnp.dot(
                h, whh, preferred_element_type=jnp.float32)
            sig = jax.nn.sigmoid(gates)             # single full-width (B,4H) EUP pass
            i_g = sig[:, 0:H]
            f_g = sig[:, H:2 * H]
            g_g = 2.0 * sig[:, 2 * H:3 * H] - 1.0   # tanh(x) = 2*sigmoid(2x) - 1 (prescaled)
            o_g = sig[:, 3 * H:4 * H]
            c = f_g * c + i_g * g_g
            h = o_g * jnp.tanh(c)
            h_steps.append(h)                       # no pad-mask multiply on the serial path

        # ---- hoisted fc (+ folded eval BatchNorm): one matmul for every timestep ----
        hseq = jnp.concatenate(h_steps, axis=0)                               # (T*B, H)
        feats = jnp.dot(hseq, wfc, preferred_element_type=jnp.float32) + bfc  # (T*B, L)

        # ---- CRF viterbi forward recursion ----
        lens = lens_ref[...]                                       # (B, 1) int32
        col = lax.broadcasted_iota(jnp.int32, (B, L), 1)
        idx3 = lax.broadcasted_iota(jnp.int32, (B, L, L), 2)
        trans_b = jnp.broadcast_to(trans[None, :, :], (B, L, L))   # hoisted out of loop
        vit = jnp.where(col == L - 2, 0.0, -10000.0)               # start_idx = L - 2
        ptrs = []
        for t in range(T):
            logit = feats[t * B:(t + 1) * B, :]                    # (B, L)
            scores = vit[:, None, :] + trans_b                     # (B,L,L): vit[b,j]+T[i,j]
            vt_max = jnp.max(scores, axis=2)                       # (B, L)
            vt_arg = jnp.min(
                jnp.where(scores == vt_max[:, :, None], idx3, L), axis=2)  # first argmax
            ptrs.append(vt_arg)
            mgt = (lens > t).astype(jnp.float32)                   # (B,1): c_lens > 0
            meq = (lens == t + 1).astype(jnp.float32)              # (B,1): c_lens == 1
            vit = mgt * (vt_max + logit) + (1.0 - mgt) * vit
            vit = vit + meq * stop                                 # stop trans at last real step

        # ---- backtracking (one-hot selects), matching the PyTorch loop exactly:
        #      path[T-1] = argmax(vit); path[k] = ptr[k+1][b, path[k+1]]; ptr[0] unused ----
        vmax = jnp.max(vit, axis=1, keepdims=True)
        path = [None] * T
        path[T - 1] = jnp.min(jnp.where(vit == vmax, col, L), axis=1, keepdims=True)
        for k in range(T - 2, -1, -1):
            onehot = col == path[k + 1]                            # exactly one True per row
            path[k] = jnp.min(jnp.where(onehot, ptrs[k + 1], L), axis=1, keepdims=True)

        lane_t = lax.broadcasted_iota(jnp.int32, (B, TP), 1)
        preds = jnp.zeros((B, TP), jnp.int32)
        for k in range(T):
            preds = jnp.where(lane_t == k, path[k], preds)
        preds_ref[...] = preds

    return kernel


def lstm_crf_pallas(x2, lens_col, slab, *, B, T, E, H, L):
    TP = 128  # lane-dense int32 output block; wrapper slices [:, :T]
    vmem = pltpu.MemorySpace.VMEM
    return pl.pallas_call(
        make_lstm_crf_kernel(B, T, E, H, L, TP),
        out_shape=jax.ShapeDtypeStruct((B, TP), jnp.int32),
        in_specs=[pl.BlockSpec(memory_space=vmem)] * 3,
        out_specs=pl.BlockSpec(memory_space=vmem),
    )(x2, lens_col, slab)


# -----------------------------------------------------------------------------
# One-time (out-of-jit) parameter prep: embedding renorm, BN fold, g-gate prescale,
# pack all constants into a single lane-dense slab.
# -----------------------------------------------------------------------------
def prepare_params(params):
    # nn.Embedding.from_pretrained(..., max_norm=6): renorm rows with L2 norm > max_norm.
    w2v = params["w2v"]
    norms = jnp.sqrt(jnp.sum(w2v * w2v, axis=1, keepdims=True))
    w2v = (w2v * jnp.minimum(1.0, params["embedding_norm"] / (norms + 1e-7))
           ).astype(jnp.float32)

    E = w2v.shape[1]
    H = params["whh_t"].shape[0]
    L = params["transitions"].shape[0]
    G = 4 * H

    # Pre-scale the g-gate columns by 2 so the kernel's sigmoid produces sigmoid(2x)
    # and tanh(x) = 2*sigmoid(2x) - 1 needs no second transcendental pass.
    def scale_g(w):
        return w.at[..., 2 * H:3 * H].multiply(2.0)

    wih_t = scale_g(params["wih_t"]).astype(jnp.float32)        # (E, 4H)
    whh_t = scale_g(params["whh_t"]).astype(jnp.float32)        # (H, 4H)
    b_row = scale_g(params["b_row"]).astype(jnp.float32)        # (1, 4H) = b_ih + b_hh

    # eval-mode BatchNorm2d(1) with default running stats before/after fc -> fold: W*s^2, b*s
    s = 1.0 / jnp.sqrt(1.0 + 1e-5)
    wfc_eff = (params["wfc_t"] * (s * s)).astype(jnp.float32)   # (H, L)
    bfc_eff = (params["bfc"] * s)[None, :].astype(jnp.float32)  # (1, L)
    transitions = params["transitions"].astype(jnp.float32)     # (L, L)
    stop_row = transitions[L - 1][None, :]                      # (1, L) transitions[stop_idx]

    slab_4h = jnp.concatenate([wih_t, whh_t, b_row], axis=0)                    # (E+H+1, 4H)
    slab_l = jnp.concatenate([wfc_eff, bfc_eff, transitions, stop_row], axis=0) # (H+L+2, L)
    slab_l = jnp.pad(slab_l, ((0, 0), (0, G - L)))                              # lane-pad
    slab = jnp.concatenate([slab_4h, slab_l], axis=0)                           # (E+2H+L+3, 4H)
    return w2v, slab, E, H, L


# -----------------------------------------------------------------------------
# Full LstmCrf.forward wrapper (embedding gather / length calc / tail in plain JAX)
# -----------------------------------------------------------------------------
def build_forward(params):
    w2v, slab, E, H, L = prepare_params(params)

    def forward(data, labels):
        # data:   (B, T) int32 word ids
        # labels: (B, T) int32 with -1 padding
        B, T = data.shape

        # get_lengths: count leading non-(-1) labels
        lengths = jnp.sum(jnp.cumprod((labels != -1).astype(jnp.int32), axis=1), axis=1)

        embedded = jnp.take(w2v, data, axis=0)                          # (B, T, E)
        x2 = jnp.transpose(embedded, (1, 0, 2)).reshape(T * B, E)       # time-major, flat
        lens_col = lengths.astype(jnp.int32)[:, None]                   # (B, 1)

        preds = lstm_crf_pallas(x2, lens_col, slab,
                                B=B, T=T, E=E, H=H, L=L)[:, :T]         # (B, T) int32

        # LstmCrf.forward tail: pad to labels width, clear hard-coded 43/44, flatten
        pad_to = labels.shape[1]
        preds = jnp.pad(preds, ((0, 0), (0, pad_to - T)))
        preds = jnp.where((preds == 43) | (preds == 44), 0, preds)
        return preds.reshape(-1), labels.reshape(-1)

    return jax.jit(forward)


if __name__ == "__main__":
    B, T = 2, 8           # batch, seq_len
    V, E = 50, 32         # word vocab, embedding_dim (w2v_weights.shape[1])
    Hh = 32               # hidden_dim (unidirectional)
    TAGS = 8              # len(tag_to_itx)
    L = TAGS + 2          # CRF n_labels

    key = jax.random.PRNGKey(0)
    ks = jax.random.split(key, 8)
    params = {
        "w2v": jax.random.normal(ks[0], (V, E), jnp.float32),
        # LSTM weights stored transposed for row-major matmul: (E,4H), (H,4H); gate order ifgo
        "wih_t": 0.1 * jax.random.normal(ks[1], (E, 4 * Hh), jnp.float32),
        "whh_t": 0.1 * jax.random.normal(ks[2], (Hh, 4 * Hh), jnp.float32),
        "b_row": 0.1 * jax.random.normal(ks[3], (1, 4 * Hh), jnp.float32),  # b_ih + b_hh
        "wfc_t": 0.1 * jax.random.normal(ks[4], (Hh, L), jnp.float32),
        "bfc": 0.1 * jax.random.normal(ks[5], (L,), jnp.float32),
        "transitions": jax.random.normal(ks[6], (L, L), jnp.float32),
        "embedding_norm": jnp.float32(6.0),
    }

    data = jax.random.randint(ks[7], (B, T), 0, V, jnp.int32)
    # batch sorted by decreasing length (pack_padded_sequence assumption); -1 is padding
    labels = jnp.array([[1, 2, 3, 0, 4, 5, 2, 1],
                        [3, 1, 0, 2, 4, -1, -1, -1]], dtype=jnp.int32)

    fwd = build_forward(params)
    preds_flat, labels_flat = fwd(data, labels)
    jax.block_until_ready((preds_flat, labels_flat))

    assert preds_flat.shape == (B * T,)
    assert labels_flat.shape == (B * T,)
    print("KERNEL_OK")
</pallas_src>

<mosaic_0001>
module attributes {stable_mosaic.version = 11 : i64} {
  func.func @kernel(%arg0: memref<16x32xf32, #tpu.memory_space<vmem>>, %arg1: memref<2x1xi32, #tpu.memory_space<vmem>>, %arg2: memref<109x128xf32, #tpu.memory_space<vmem>>, %arg3: memref<2x128xi32, #tpu.memory_space<vmem>>) attributes {dimension_semantics = [], scalar_prefetch = 0 : i64, scratch_operands = 0 : i64, tpu.core_type = #tpu.core_type<tc>} {
    %c0 = arith.constant 0 : index
    %c0_0 = arith.constant 0 : index
    %0 = vector.load %arg2[%c0, %c0_0] : memref<109x128xf32, #tpu.memory_space<vmem>>, vector<32x128xf32>
    %c32 = arith.constant 32 : index
    %c0_1 = arith.constant 0 : index
    %1 = vector.load %arg2[%c32, %c0_1] : memref<109x128xf32, #tpu.memory_space<vmem>>, vector<32x128xf32>
    %c64 = arith.constant 64 : index
    %c0_2 = arith.constant 0 : index
    %2 = vector.load %arg2[%c64, %c0_2] : memref<109x128xf32, #tpu.memory_space<vmem>>, vector<1x128xf32>
    %c65 = arith.constant 65 : index
    %c0_3 = arith.constant 0 : index
    %3 = vector.load %arg2[%c65, %c0_3] : memref<109x128xf32, #tpu.memory_space<vmem>>, vector<32x10xf32>
    %c97 = arith.constant 97 : index
    %c0_4 = arith.constant 0 : index
    %4 = vector.load %arg2[%c97, %c0_4] : memref<109x128xf32, #tpu.memory_space<vmem>>, vector<1x10xf32>
    %c98 = arith.constant 98 : index
    %c0_5 = arith.constant 0 : index
    %5 = vector.load %arg2[%c98, %c0_5] : memref<109x128xf32, #tpu.memory_space<vmem>>, vector<10x10xf32>
    %c108 = arith.constant 108 : index
    %c0_6 = arith.constant 0 : index
    %6 = vector.load %arg2[%c108, %c0_6] : memref<109x128xf32, #tpu.memory_space<vmem>>, vector<1x10xf32>
    %c0_7 = arith.constant 0 : index
    %c0_8 = arith.constant 0 : index
    %7 = vector.load %arg0[%c0_7, %c0_8] : memref<16x32xf32, #tpu.memory_space<vmem>>, vector<16x32xf32>
    %cst = arith.constant dense<0.000000e+00> : vector<16x128xf32>
    %8 = tpu.matmul %7, %0, %cst {dimension_numbers = #tpu.dot_dimension_numbers<[1], [0], [0], [1], [0, 0, 1, 1], [], []>} : vector<16x32xf32>, vector<32x128xf32>, vector<16x128xf32> -> vector<16x128xf32>
    %9 = vector.broadcast %2 : vector<1x128xf32> to vector<16x128xf32>
    %10 = arith.addf %8, %9 : vector<16x128xf32>
    %cst_9 = arith.constant 0.000000e+00 : f32
    %11 = vector.broadcast %cst_9 : f32 to vector<2x32xf32>
    %cst_10 = arith.constant 0.000000e+00 : f32
    %12 = vector.broadcast %cst_10 : f32 to vector<2x32xf32>
    %13 = vector.extract_strided_slice %10 {offsets = [0, 0], sizes = [2, 128], strides = [1, 1]} : vector<16x128xf32> to vector<2x128xf32>
    %cst_11 = arith.constant dense<0.000000e+00> : vector<2x128xf32>
    %14 = tpu.matmul %11, %1, %cst_11 {dimension_numbers = #tpu.dot_dimension_numbers<[1], [0], [0], [1], [0, 0, 1, 1], [], []>} : vector<2x32xf32>, vector<32x128xf32>, vector<2x128xf32> -> vector<2x128xf32>
    %15 = arith.addf %13, %14 : vector<2x128xf32>
    %16 = arith.negf %15 : vector<2x128xf32>
    %17 = math.exp %16 : vector<2x128xf32>
    %cst_12 = arith.constant 1.000000e+00 : f32
    %18 = vector.broadcast %cst_12 : f32 to vector<2x128xf32>
    %19 = arith.addf %18, %17 : vector<2x128xf32>
    %20 = arith.divf %18, %19 : vector<2x128xf32>
    %21 = vector.extract_strided_slice %20 {offsets = [0, 0], sizes = [2, 32], strides = [1, 1]} : vector<2x128xf32> to vector<2x32xf32>
    %22 = vector.extract_strided_slice %20 {offsets = [0, 32], sizes = [2, 32], strides = [1, 1]} : vector<2x128xf32> to vector<2x32xf32>
    %23 = vector.extract_strided_slice %20 {offsets = [0, 64], sizes = [2, 32], strides = [1, 1]} : vector<2x128xf32> to vector<2x32xf32>
    %cst_13 = arith.constant 2.000000e+00 : f32
    %24 = vector.broadcast %cst_13 : f32 to vector<2x32xf32>
    %25 = arith.mulf %24, %23 : vector<2x32xf32>
    %cst_14 = arith.constant 1.000000e+00 : f32
    %26 = vector.broadcast %cst_14 : f32 to vector<2x32xf32>
    %27 = arith.subf %25, %26 : vector<2x32xf32>
    %28 = vector.extract_strided_slice %20 {offsets = [0, 96], sizes = [2, 32], strides = [1, 1]} : vector<2x128xf32> to vector<2x32xf32>
    %29 = arith.mulf %22, %12 : vector<2x32xf32>
    %30 = arith.mulf %21, %27 : vector<2x32xf32>
    %31 = arith.addf %29, %30 : vector<2x32xf32>
    %32 = math.tanh %31 : vector<2x32xf32>
    %33 = arith.mulf %28, %32 : vector<2x32xf32>
    %34 = vector.extract_strided_slice %10 {offsets = [2, 0], sizes = [2, 128], strides = [1, 1]} : vector<16x128xf32> to vector<2x128xf32>
    %cst_15 = arith.constant dense<0.000000e+00> : vector<2x128xf32>
    %35 = tpu.matmul %33, %1, %cst_15 {dimension_numbers = #tpu.dot_dimension_numbers<[1], [0], [0], [1], [0, 0, 1, 1], [], []>} : vector<2x32xf32>, vector<32x128xf32>, vector<2x128xf32> -> vector<2x128xf32>
    %36 = arith.addf %34, %35 : vector<2x128xf32>
    %37 = arith.negf %36 : vector<2x128xf32>
    %38 = math.exp %37 : vector<2x128xf32>
    %cst_16 = arith.constant 1.000000e+00 : f32
    %39 = vector.broadcast %cst_16 : f32 to vector<2x128xf32>
    %40 = arith.addf %39, %38 : vector<2x128xf32>
    %41 = arith.divf %39, %40 : vector<2x128xf32>
    %42 = vector.extract_strided_slice %41 {offsets = [0, 0], sizes = [2, 32], strides = [1, 1]} : vector<2x128xf32> to vector<2x32xf32>
    %43 = vector.extract_strided_slice %41 {offsets = [0, 32], sizes = [2, 32], strides = [1, 1]} : vector<2x128xf32> to vector<2x32xf32>
    %44 = vector.extract_strided_slice %41 {offsets = [0, 64], sizes = [2, 32], strides = [1, 1]} : vector<2x128xf32> to vector<2x32xf32>
    %cst_17 = arith.constant 2.000000e+00 : f32
    %45 = vector.broadcast %cst_17 : f32 to vector<2x32xf32>
    %46 = arith.mulf %45, %44 : vector<2x32xf32>
    %cst_18 = arith.constant 1.000000e+00 : f32
    %47 = vector.broadcast %cst_18 : f32 to vector<2x32xf32>
    %48 = arith.subf %46, %47 : vector<2x32xf32>
    %49 = vector.extract_strided_slice %41 {offsets = [0, 96], sizes = [2, 32], strides = [1, 1]} : vector<2x128xf32> to vector<2x32xf32>
    %50 = arith.mulf %43, %31 : vector<2x32xf32>
    %51 = arith.mulf %42, %48 : vector<2x32xf32>
    %52 = arith.addf %50, %51 : vector<2x32xf32>
    %53 = math.tanh %52 : vector<2x32xf32>
    %54 = arith.mulf %49, %53 : vector<2x32xf32>
    %55 = vector.extract_strided_slice %10 {offsets = [4, 0], sizes = [2, 128], strides = [1, 1]} : vector<16x128xf32> to vector<2x128xf32>
    %cst_19 = arith.constant dense<0.000000e+00> : vector<2x128xf32>
    %56 = tpu.matmul %54, %1, %cst_19 {dimension_numbers = #tpu.dot_dimension_numbers<[1], [0], [0], [1], [0, 0, 1, 1], [], []>} : vector<2x32xf32>, vector<32x128xf32>, vector<2x128xf32> -> vector<2x128xf32>
    %57 = arith.addf %55, %56 : vector<2x128xf32>
    %58 = arith.negf %57 : vector<2x128xf32>
    %59 = math.exp %58 : vector<2x128xf32>
    %cst_20 = arith.constant 1.000000e+00 : f32
    %60 = vector.broadcast %cst_20 : f32 to vector<2x128xf32>
    %61 = arith.addf %60, %59 : vector<2x128xf32>
    %62 = arith.divf %60, %61 : vector<2x128xf32>
    %63 = vector.extract_strided_slice %62 {offsets = [0, 0], sizes = [2, 32], strides = [1, 1]} : vector<2x128xf32> to vector<2x32xf32>
    %64 = vector.extract_strided_slice %62 {offsets = [0, 32], sizes = [2, 32], strides = [1, 1]} : vector<2x128xf32> to vector<2x32xf32>
    %65 = vector.extract_strided_slice %62 {offsets = [0, 64], sizes = [2, 32], strides = [1, 1]} : vector<2x128xf32> to vector<2x32xf32>
    %cst_21 = arith.constant 2.000000e+00 : f32
    %66 = vector.broadcast %cst_21 : f32 to vector<2x32xf32>
    %67 = arith.mulf %66, %65 : vector<2x32xf32>
    %cst_22 = arith.constant 1.000000e+00 : f32
    %68 = vector.broadcast %cst_22 : f32 to vector<2x32xf32>
    %69 = arith.subf %67, %68 : vector<2x32xf32>
    %70 = vector.extract_strided_slice %62 {offsets = [0, 96], sizes = [2, 32], strides = [1, 1]} : vector<2x128xf32> to vector<2x32xf32>
    %71 = arith.mulf %64, %52 : vector<2x32xf32>
    %72 = arith.mulf %63, %69 : vector<2x32xf32>
    %73 = arith.addf %71, %72 : vector<2x32xf32>
    %74 = math.tanh %73 : vector<2x32xf32>
    %75 = arith.mulf %70, %74 : vector<2x32xf32>
    %76 = vector.extract_strided_slice %10 {offsets = [6, 0], sizes = [2, 128], strides = [1, 1]} : vector<16x128xf32> to vector<2x128xf32>
    %cst_23 = arith.constant dense<0.000000e+00> : vector<2x128xf32>
    %77 = tpu.matmul %75, %1, %cst_23 {dimension_numbers = #tpu.dot_dimension_numbers<[1], [0], [0], [1], [0, 0, 1, 1], [], []>} : vector<2x32xf32>, vector<32x128xf32>, vector<2x128xf32> -> vector<2x128xf32>
    %78 = arith.addf %76, %77 : vector<2x128xf32>
    %79 = arith.negf %78 : vector<2x128xf32>
    %80 = math.exp %79 : vector<2x128xf32>
    %cst_24 = arith.constant 1.000000e+00 : f32
    %81 = vector.broadcast %cst_24 : f32 to vector<2x128xf32>
    %82 = arith.addf %81, %80 : vector<2x128xf32>
    %83 = arith.divf %81, %82 : vector<2x128xf32>
    %84 = vector.extract_strided_slice %83 {offsets = [0, 0], sizes = [2, 32], strides = [1, 1]} : vector<2x128xf32> to vector<2x32xf32>
    %85 = vector.extract_strided_slice %83 {offsets = [0, 32], sizes = [2, 32], strides = [1, 1]} : vector<2x128xf32> to vector<2x32xf32>
    %86 = vector.extract_strided_slice %83 {offsets = [0, 64], sizes = [2, 32], strides = [1, 1]} : vector<2x128xf32> to vector<2x32xf32>
    %cst_25 = arith.constant 2.000000e+00 : f32
    %87 = vector.broadcast %cst_25 : f32 to vector<2x32xf32>
    %88 = arith.mulf %87, %86 : vector<2x32xf32>
    %cst_26 = arith.constant 1.000000e+00 : f32
    %89 = vector.broadcast %cst_26 : f32 to vector<2x32xf32>
    %90 = arith.subf %88, %89 : vector<2x32xf32>
    %91 = vector.extract_strided_slice %83 {offsets = [0, 96], sizes = [2, 32], strides = [1, 1]} : vector<2x128xf32> to vector<2x32xf32>
    %92 = arith.mulf %85, %73 : vector<2x32xf32>
    %93 = arith.mulf %84, %90 : vector<2x32xf32>
    %94 = arith.addf %92, %93 : vector<2x32xf32>
    %95 = math.tanh %94 : vector<2x32xf32>
    %96 = arith.mulf %91, %95 : vector<2x32xf32>
    %97 = vector.extract_strided_slice %10 {offsets = [8, 0], sizes = [2, 128], strides = [1, 1]} : vector<16x128xf32> to vector<2x128xf32>
    %cst_27 = arith.constant dense<0.000000e+00> : vector<2x128xf32>
    %98 = tpu.matmul %96, %1, %cst_27 {dimension_numbers = #tpu.dot_dimension_numbers<[1], [0], [0], [1], [0, 0, 1, 1], [], []>} : vector<2x32xf32>, vector<32x128xf32>, vector<2x128xf32> -> vector<2x128xf32>
    %99 = arith.addf %97, %98 : vector<2x128xf32>
    %100 = arith.negf %99 : vector<2x128xf32>
    %101 = math.exp %100 : vector<2x128xf32>
    %cst_28 = arith.constant 1.000000e+00 : f32
    %102 = vector.broadcast %cst_28 : f32 to vector<2x128xf32>
    %103 = arith.addf %102, %101 : vector<2x128xf32>
    %104 = arith.divf %102, %103 : vector<2x128xf32>
    %105 = vector.extract_strided_slice %104 {offsets = [0, 0], sizes = [2, 32], strides = [1, 1]} : vector<2x128xf32> to vector<2x32xf32>
    %106 = vector.extract_strided_slice %104 {offsets = [0, 32], sizes = [2, 32], strides = [1, 1]} : vector<2x128xf32> to vector<2x32xf32>
    %107 = vector.extract_strided_slice %104 {offsets = [0, 64], sizes = [2, 32], strides = [1, 1]} : vector<2x128xf32> to vector<2x32xf32>
    %cst_29 = arith.constant 2.000000e+00 : f32
    %108 = vector.broadcast %cst_29 : f32 to vector<2x32xf32>
    %109 = arith.mulf %108, %107 : vector<2x32xf32>
    %cst_30 = arith.constant 1.000000e+00 : f32
    %110 = vector.broadcast %cst_30 : f32 to vector<2x32xf32>
    %111 = arith.subf %109, %110 : vector<2x32xf32>
    %112 = vector.extract_strided_slice %104 {offsets = [0, 96], sizes = [2, 32], strides = [1, 1]} : vector<2x128xf32> to vector<2x32xf32>
    %113 = arith.mulf %106, %94 : vector<2x32xf32>
    %114 = arith.mulf %105, %111 : vector<2x32xf32>
    %115 = arith.addf %113, %114 : vector<2x32xf32>
    %116 = math.tanh %115 : vector<2x32xf32>
    %117 = arith.mulf %112, %116 : vector<2x32xf32>
    %118 = vector.extract_strided_slice %10 {offsets = [10, 0], sizes = [2, 128], strides = [1, 1]} : vector<16x128xf32> to vector<2x128xf32>
    %cst_31 = arith.constant dense<0.000000e+00> : vector<2x128xf32>
    %119 = tpu.matmul %117, %1, %cst_31 {dimension_numbers = #tpu.dot_dimension_numbers<[1], [0], [0], [1], [0, 0, 1, 1], [], []>} : vector<2x32xf32>, vector<32x128xf32>, vector<2x128xf32> -> vector<2x128xf32>
    %120 = arith.addf %118, %119 : vector<2x128xf32>
    %121 = arith.negf %120 : vector<2x128xf32>
    %122 = math.exp %121 : vector<2x128xf32>
    %cst_32 = arith.constant 1.000000e+00 : f32
    %123 = vector.broadcast %cst_32 : f32 to vector<2x128xf32>
    %124 = arith.addf %123, %122 : vector<2x128xf32>
    %125 = arith.divf %123, %124 : vector<2x128xf32>
    %126 = vector.extract_strided_slice %125 {offsets = [0, 0], sizes = [2, 32], strides = [1, 1]} : vector<2x128xf32> to vector<2x32xf32>
    %127 = vector.extract_strided_slice %125 {offsets = [0, 32], sizes = [2, 32], strides = [1, 1]} : vector<2x128xf32> to vector<2x32xf32>
    %128 = vector.extract_strided_slice %125 {offsets = [0, 64], sizes = [2, 32], strides = [1, 1]} : vector<2x128xf32> to vector<2x32xf32>
    %cst_33 = arith.constant 2.000000e+00 : f32
    %129 = vector.broadcast %cst_33 : f32 to vector<2x32xf32>
    %130 = arith.mulf %129, %128 : vector<2x32xf32>
    %cst_34 = arith.constant 1.000000e+00 : f32
    %131 = vector.broadcast %cst_34 : f32 to vector<2x32xf32>
    %132 = arith.subf %130, %131 : vector<2x32xf32>
    %133 = vector.extract_strided_slice %125 {offsets = [0, 96], sizes = [2, 32], strides = [1, 1]} : vector<2x128xf32> to vector<2x32xf32>
    %134 = arith.mulf %127, %115 : vector<2x32xf32>
    %135 = arith.mulf %126, %132 : vector<2x32xf32>
    %136 = arith.addf %134, %135 : vector<2x32xf32>
    %137 = math.tanh %136 : vector<2x32xf32>
    %138 = arith.mulf %133, %137 : vector<2x32xf32>
    %139 = vector.extract_strided_slice %10 {offsets = [12, 0], sizes = [2, 128], strides = [1, 1]} : vector<16x128xf32> to vector<2x128xf32>
    %cst_35 = arith.constant dense<0.000000e+00> : vector<2x128xf32>
    %140 = tpu.matmul %138, %1, %cst_35 {dimension_numbers = #tpu.dot_dimension_numbers<[1], [0], [0], [1], [0, 0, 1, 1], [], []>} : vector<2x32xf32>, vector<32x128xf32>, vector<2x128xf32> -> vector<2x128xf32>
    %141 = arith.addf %139, %140 : vector<2x128xf32>
    %142 = arith.negf %141 : vector<2x128xf32>
    %143 = math.exp %142 : vector<2x128xf32>
    %cst_36 = arith.constant 1.000000e+00 : f32
    %144 = vector.broadcast %cst_36 : f32 to vector<2x128xf32>
    %145 = arith.addf %144, %143 : vector<2x128xf32>
    %146 = arith.divf %144, %145 : vector<2x128xf32>
    %147 = vector.extract_strided_slice %146 {offsets = [0, 0], sizes = [2, 32], strides = [1, 1]} : vector<2x128xf32> to vector<2x32xf32>
    %148 = vector.extract_strided_slice %146 {offsets = [0, 32], sizes = [2, 32], strides = [1, 1]} : vector<2x128xf32> to vector<2x32xf32>
    %149 = vector.extract_strided_slice %146 {offsets = [0, 64], sizes = [2, 32], strides = [1, 1]} : vector<2x128xf32> to vector<2x32xf32>
    %cst_37 = arith.constant 2.000000e+00 : f32
    %150 = vector.broadcast %cst_37 : f32 to vector<2x32xf32>
    %151 = arith.mulf %150, %149 : vector<2x32xf32>
    %cst_38 = arith.constant 1.000000e+00 : f32
    %152 = vector.broadcast %cst_38 : f32 to vector<2x32xf32>
    %153 = arith.subf %151, %152 : vector<2x32xf32>
    %154 = vector.extract_strided_slice %146 {offsets = [0, 96], sizes = [2, 32], strides = [1, 1]} : vector<2x128xf32> to vector<2x32xf32>
    %155 = arith.mulf %148, %136 : vector<2x32xf32>
    %156 = arith.mulf %147, %153 : vector<2x32xf32>
    %157 = arith.addf %155, %156 : vector<2x32xf32>
    %158 = math.tanh %157 : vector<2x32xf32>
    %159 = arith.mulf %154, %158 : vector<2x32xf32>
    %160 = vector.extract_strided_slice %10 {offsets = [14, 0], sizes = [2, 128], strides = [1, 1]} : vector<16x128xf32> to vector<2x128xf32>
    %cst_39 = arith.constant dense<0.000000e+00> : vector<2x128xf32>
    %161 = tpu.matmul %159, %1, %cst_39 {dimension_numbers = #tpu.dot_dimension_numbers<[1], [0], [0], [1], [0, 0, 1, 1], [], []>} : vector<2x32xf32>, vector<32x128xf32>, vector<2x128xf32> -> vector<2x128xf32>
    %162 = arith.addf %160, %161 : vector<2x128xf32>
    %163 = arith.negf %162 : vector<2x128xf32>
    %164 = math.exp %163 : vector<2x128xf32>
    %cst_40 = arith.constant 1.000000e+00 : f32
    %165 = vector.broadcast %cst_40 : f32 to vector<2x128xf32>
    %166 = arith.addf %165, %164 : vector<2x128xf32>
    %167 = arith.divf %165, %166 : vector<2x128xf32>
    %168 = vector.extract_strided_slice %167 {offsets = [0, 0], sizes = [2, 32], strides = [1, 1]} : vector<2x128xf32> to vector<2x32xf32>
    %169 = vector.extract_strided_slice %167 {offsets = [0, 32], sizes = [2, 32], strides = [1, 1]} : vector<2x128xf32> to vector<2x32xf32>
    %170 = vector.extract_strided_slice %167 {offsets = [0, 64], sizes = [2, 32], strides = [1, 1]} : vector<2x128xf32> to vector<2x32xf32>
    %cst_41 = arith.constant 2.000000e+00 : f32
    %171 = vector.broadcast %cst_41 : f32 to vector<2x32xf32>
    %172 = arith.mulf %171, %170 : vector<2x32xf32>
    %cst_42 = arith.constant 1.000000e+00 : f32
    %173 = vector.broadcast %cst_42 : f32 to vector<2x32xf32>
    %174 = arith.subf %172, %173 : vector<2x32xf32>
    %175 = vector.extract_strided_slice %167 {offsets = [0, 96], sizes = [2, 32], strides = [1, 1]} : vector<2x128xf32> to vector<2x32xf32>
    %176 = arith.mulf %169, %157 : vector<2x32xf32>
    %177 = arith.mulf %168, %174 : vector<2x32xf32>
    %178 = arith.addf %176, %177 : vector<2x32xf32>
    %179 = math.tanh %178 : vector<2x32xf32>
    %180 = arith.mulf %175, %179 : vector<2x32xf32>
    %181 = tpu.concatenate %33, %54, %75, %96, %117, %138, %159, %180 in 0 : vector<2x32xf32>, vector<2x32xf32>, vector<2x32xf32>, vector<2x32xf32>, vector<2x32xf32>, vector<2x32xf32>, vector<2x32xf32>, vector<2x32xf32> -> vector<16x32xf32>
    %cst_43 = arith.constant dense<0.000000e+00> : vector<16x10xf32>
    %182 = tpu.matmul %181, %3, %cst_43 {dimension_numbers = #tpu.dot_dimension_numbers<[1], [0], [0], [1], [0, 0, 1, 1], [], []>} : vector<16x32xf32>, vector<32x10xf32>, vector<16x10xf32> -> vector<16x10xf32>
    %183 = vector.broadcast %4 : vector<1x10xf32> to vector<16x10xf32>
    %184 = arith.addf %182, %183 : vector<16x10xf32>
    %c0_44 = arith.constant 0 : index
    %c0_45 = arith.constant 0 : index
    %185 = vector.load %arg1[%c0_44, %c0_45] : memref<2x1xi32, #tpu.memory_space<vmem>>, vector<2x1xi32>
    %186 = tpu.iota {dimensions = array<i32: 1>} : vector<2x10xi32>
    %187 = tpu.iota {dimensions = array<i32: 2>} : vector<2x10x10xi32>
    %188 = vector.shape_cast %5 : vector<10x10xf32> to vector<1x10x10xf32>
    %189 = vector.shape_cast %188 : vector<1x10x10xf32> to vector<1x10x10xf32>
    %190 = vector.broadcast %189 : vector<1x10x10xf32> to vector<2x10x10xf32>
    %c8_i32 = arith.constant 8 : i32
    %191 = vector.broadcast %c8_i32 : i32 to vector<2x10xi32>
    %192 = arith.cmpi eq, %186, %191 : vector<2x10xi32>
    %cst_46 = arith.constant 0.000000e+00 : f32
    %cst_47 = arith.constant -1.000000e+04 : f32
    %193 = vector.broadcast %cst_46 : f32 to vector<2x10xf32>
    %194 = vector.broadcast %cst_47 : f32 to vector<2x10xf32>
    %195 = arith.select %192, %193, %194 : vector<2x10xi1>, vector<2x10xf32>
    %196 = vector.extract_strided_slice %184 {offsets = [0, 0], sizes = [2, 10], strides = [1, 1]} : vector<16x10xf32> to vector<2x10xf32>
    %197 = vector.shape_cast %195 : vector<2x10xf32> to vector<2x1x10xf32>
    %198 = vector.broadcast %197 : vector<2x1x10xf32> to vector<2x10x10xf32>
    %199 = arith.addf %198, %190 : vector<2x10x10xf32>
    %cst_48 = arith.constant dense<0xFF800000> : vector<2x10xf32>
    %200 = vector.multi_reduction <maximumf>, %199, %cst_48 [2] : vector<2x10x10xf32> to vector<2x10xf32>
    %c0_i32 = arith.constant 0 : i32
    %201 = vector.broadcast %c0_i32 : i32 to vector<2x1xi32>
    %202 = arith.cmpi sgt, %185, %201 : vector<2x1xi32>
    %203 = arith.extui %202 : vector<2x1xi1> to vector<2x1xi32>
    %204 = arith.sitofp %203 : vector<2x1xi32> to vector<2x1xf32>
    %c1_i32 = arith.constant 1 : i32
    %205 = vector.broadcast %c1_i32 : i32 to vector<2x1xi32>
    %206 = arith.cmpi eq, %185, %205 : vector<2x1xi32>
    %207 = arith.extui %206 : vector<2x1xi1> to vector<2x1xi32>
    %208 = arith.sitofp %207 : vector<2x1xi32> to vector<2x1xf32>
    %209 = arith.addf %200, %196 : vector<2x10xf32>
    %210 = vector.broadcast %204 : vector<2x1xf32> to vector<2x10xf32>
    %211 = arith.mulf %210, %209 : vector<2x10xf32>
    %cst_49 = arith.constant 1.000000e+00 : f32
    %212 = vector.broadcast %cst_49 : f32 to vector<2x1xf32>
    %213 = arith.subf %212, %204 : vector<2x1xf32>
    %214 = vector.broadcast %213 : vector<2x1xf32> to vector<2x10xf32>
    %215 = arith.mulf %214, %195 : vector<2x10xf32>
    %216 = arith.addf %211, %215 : vector<2x10xf32>
    %217 = vector.broadcast %208 : vector<2x1xf32> to vector<2x10xf32>
    %218 = vector.broadcast %6 : vector<1x10xf32> to vector<2x10xf32>
    %219 = arith.mulf %217, %218 : vector<2x10xf32>
    %220 = arith.addf %216, %219 : vector<2x10xf32>
    %221 = vector.extract_strided_slice %184 {offsets = [2, 0], sizes = [2, 10], strides = [1, 1]} : vector<16x10xf32> to vector<2x10xf32>
    %222 = vector.shape_cast %220 : vector<2x10xf32> to vector<2x1x10xf32>
    %223 = vector.broadcast %222 : vector<2x1x10xf32> to vector<2x10x10xf32>
    %224 = arith.addf %223, %190 : vector<2x10x10xf32>
    %cst_50 = arith.constant dense<0xFF800000> : vector<2x10xf32>
    %225 = vector.multi_reduction <maximumf>, %224, %cst_50 [2] : vector<2x10x10xf32> to vector<2x10xf32>
    %226 = vector.shape_cast %225 : vector<2x10xf32> to vector<2x10x1xf32>
    %227 = vector.broadcast %226 : vector<2x10x1xf32> to vector<2x10x10xf32>
    %228 = arith.cmpf oeq, %224, %227 : vector<2x10x10xf32>
    %c10_i32 = arith.constant 10 : i32
    %229 = vector.broadcast %c10_i32 : i32 to vector<2x10x10xi32>
    %230 = arith.select %228, %187, %229 : vector<2x10x10xi1>, vector<2x10x10xi32>
    %cst_51 = arith.constant dense<2147483647> : vector<2x10xi32>
    %231 = vector.multi_reduction <minsi>, %230, %cst_51 [2] : vector<2x10x10xi32> to vector<2x10xi32>
    %c1_i32_52 = arith.constant 1 : i32
    %232 = vector.broadcast %c1_i32_52 : i32 to vector<2x1xi32>
    %233 = arith.cmpi sgt, %185, %232 : vector<2x1xi32>
    %234 = arith.extui %233 : vector<2x1xi1> to vector<2x1xi32>
    %235 = arith.sitofp %234 : vector<2x1xi32> to vector<2x1xf32>
    %c2_i32 = arith.constant 2 : i32
    %236 = vector.broadcast %c2_i32 : i32 to vector<2x1xi32>
    %237 = arith.cmpi eq, %185, %236 : vector<2x1xi32>
    %238 = arith.extui %237 : vector<2x1xi1> to vector<2x1xi32>
    %239 = arith.sitofp %238 : vector<2x1xi32> to vector<2x1xf32>
    %240 = arith.addf %225, %221 : vector<2x10xf32>
    %241 = vector.broadcast %235 : vector<2x1xf32> to vector<2x10xf32>
    %242 = arith.mulf %241, %240 : vector<2x10xf32>
    %cst_53 = arith.constant 1.000000e+00 : f32
    %243 = vector.broadcast %cst_53 : f32 to vector<2x1xf32>
    %244 = arith.subf %243, %235 : vector<2x1xf32>
    %245 = vector.broadcast %244 : vector<2x1xf32> to vector<2x10xf32>
    %246 = arith.mulf %245, %220 : vector<2x10xf32>
    %247 = arith.addf %242, %246 : vector<2x10xf32>
    %248 = vector.broadcast %239 : vector<2x1xf32> to vector<2x10xf32>
    %249 = vector.broadcast %6 : vector<1x10xf32> to vector<2x10xf32>
    %250 = arith.mulf %248, %249 : vector<2x10xf32>
    %251 = arith.addf %247, %250 : vector<2x10xf32>
    %252 = vector.extract_strided_slice %184 {offsets = [4, 0], sizes = [2, 10], strides = [1, 1]} : vector<16x10xf32> to vector<2x10xf32>
    %253 = vector.shape_cast %251 : vector<2x10xf32> to vector<2x1x10xf32>
    %254 = vector.broadcast %253 : vector<2x1x10xf32> to vector<2x10x10xf32>
    %255 = arith.addf %254, %190 : vector<2x10x10xf32>
    %cst_54 = arith.constant dense<0xFF800000> : vector<2x10xf32>
    %256 = vector.multi_reduction <maximumf>, %255, %cst_54 [2] : vector<2x10x10xf32> to vector<2x10xf32>
    %257 = vector.shape_cast %256 : vector<2x10xf32> to vector<2x10x1xf32>
    %258 = vector.broadcast %257 : vector<2x10x1xf32> to vector<2x10x10xf32>
    %259 = arith.cmpf oeq, %255, %258 : vector<2x10x10xf32>
    %c10_i32_55 = arith.constant 10 : i32
    %260 = vector.broadcast %c10_i32_55 : i32 to vector<2x10x10xi32>
    %261 = arith.select %259, %187, %260 : vector<2x10x10xi1>, vector<2x10x10xi32>
    %cst_56 = arith.constant dense<2147483647> : vector<2x10xi32>
    %262 = vector.multi_reduction <minsi>, %261, %cst_56 [2] : vector<2x10x10xi32> to vector<2x10xi32>
    %c2_i32_57 = arith.constant 2 : i32
    %263 = vector.broadcast %c2_i32_57 : i32 to vector<2x1xi32>
    %264 = arith.cmpi sgt, %185, %263 : vector<2x1xi32>
    %265 = arith.extui %264 : vector<2x1xi1> to vector<2x1xi32>
    %266 = arith.sitofp %265 : vector<2x1xi32> to vector<2x1xf32>
    %c3_i32 = arith.constant 3 : i32
    %267 = vector.broadcast %c3_i32 : i32 to vector<2x1xi32>
    %268 = arith.cmpi eq, %185, %267 : vector<2x1xi32>
    %269 = arith.extui %268 : vector<2x1xi1> to vector<2x1xi32>
    %270 = arith.sitofp %269 : vector<2x1xi32> to vector<2x1xf32>
    %271 = arith.addf %256, %252 : vector<2x10xf32>
    %272 = vector.broadcast %266 : vector<2x1xf32> to vector<2x10xf32>
    %273 = arith.mulf %272, %271 : vector<2x10xf32>
    %cst_58 = arith.constant 1.000000e+00 : f32
    %274 = vector.broadcast %cst_58 : f32 to vector<2x1xf32>
    %275 = arith.subf %274, %266 : vector<2x1xf32>
    %276 = vector.broadcast %275 : vector<2x1xf32> to vector<2x10xf32>
    %277 = arith.mulf %276, %251 : vector<2x10xf32>
    %278 = arith.addf %273, %277 : vector<2x10xf32>
    %279 = vector.broadcast %270 : vector<2x1xf32> to vector<2x10xf32>
    %280 = vector.broadcast %6 : vector<1x10xf32> to vector<2x10xf32>
    %281 = arith.mulf %279, %280 : vector<2x10xf32>
    %282 = arith.addf %278, %281 : vector<2x10xf32>
    %283 = vector.extract_strided_slice %184 {offsets = [6, 0], sizes = [2, 10], strides = [1, 1]} : vector<16x10xf32> to vector<2x10xf32>
    %284 = vector.shape_cast %282 : vector<2x10xf32> to vector<2x1x10xf32>
    %285 = vector.broadcast %284 : vector<2x1x10xf32> to vector<2x10x10xf32>
    %286 = arith.addf %285, %190 : vector<2x10x10xf32>
    %cst_59 = arith.constant dense<0xFF800000> : vector<2x10xf32>
    %287 = vector.multi_reduction <maximumf>, %286, %cst_59 [2] : vector<2x10x10xf32> to vector<2x10xf32>
    %288 = vector.shape_cast %287 : vector<2x10xf32> to vector<2x10x1xf32>
    %289 = vector.broadcast %288 : vector<2x10x1xf32> to vector<2x10x10xf32>
    %290 = arith.cmpf oeq, %286, %289 : vector<2x10x10xf32>
    %c10_i32_60 = arith.constant 10 : i32
    %291 = vector.broadcast %c10_i32_60 : i32 to vector<2x10x10xi32>
    %292 = arith.select %290, %187, %291 : vector<2x10x10xi1>, vector<2x10x10xi32>
    %cst_61 = arith.constant dense<2147483647> : vector<2x10xi32>
    %293 = vector.multi_reduction <minsi>, %292, %cst_61 [2] : vector<2x10x10xi32> to vector<2x10xi32>
    %c3_i32_62 = arith.constant 3 : i32
    %294 = vector.broadcast %c3_i32_62 : i32 to vector<2x1xi32>
    %295 = arith.cmpi sgt, %185, %294 : vector<2x1xi32>
    %296 = arith.extui %295 : vector<2x1xi1> to vector<2x1xi32>
    %297 = arith.sitofp %296 : vector<2x1xi32> to vector<2x1xf32>
    %c4_i32 = arith.constant 4 : i32
    %298 = vector.broadcast %c4_i32 : i32 to vector<2x1xi32>
    %299 = arith.cmpi eq, %185, %298 : vector<2x1xi32>
    %300 = arith.extui %299 : vector<2x1xi1> to vector<2x1xi32>
    %301 = arith.sitofp %300 : vector<2x1xi32> to vector<2x1xf32>
    %302 = arith.addf %287, %283 : vector<2x10xf32>
    %303 = vector.broadcast %297 : vector<2x1xf32> to vector<2x10xf32>
    %304 = arith.mulf %303, %302 : vector<2x10xf32>
    %cst_63 = arith.constant 1.000000e+00 : f32
    %305 = vector.broadcast %cst_63 : f32 to vector<2x1xf32>
    %306 = arith.subf %305, %297 : vector<2x1xf32>
    %307 = vector.broadcast %306 : vector<2x1xf32> to vector<2x10xf32>
    %308 = arith.mulf %307, %282 : vector<2x10xf32>
    %309 = arith.addf %304, %308 : vector<2x10xf32>
    %310 = vector.broadcast %301 : vector<2x1xf32> to vector<2x10xf32>
    %311 = vector.broadcast %6 : vector<1x10xf32> to vector<2x10xf32>
    %312 = arith.mulf %310, %311 : vector<2x10xf32>
    %313 = arith.addf %309, %312 : vector<2x10xf32>
    %314 = vector.extract_strided_slice %184 {offsets = [8, 0], sizes = [2, 10], strides = [1, 1]} : vector<16x10xf32> to vector<2x10xf32>
    %315 = vector.shape_cast %313 : vector<2x10xf32> to vector<2x1x10xf32>
    %316 = vector.broadcast %315 : vector<2x1x10xf32> to vector<2x10x10xf32>
    %317 = arith.addf %316, %190 : vector<2x10x10xf32>
    %cst_64 = arith.constant dense<0xFF800000> : vector<2x10xf32>
    %318 = vector.multi_reduction <maximumf>, %317, %cst_64 [2] : vector<2x10x10xf32> to vector<2x10xf32>
    %319 = vector.shape_cast %318 : vector<2x10xf32> to vector<2x10x1xf32>
    %320 = vector.broadcast %319 : vector<2x10x1xf32> to vector<2x10x10xf32>
    %321 = arith.cmpf oeq, %317, %320 : vector<2x10x10xf32>
    %c10_i32_65 = arith.constant 10 : i32
    %322 = vector.broadcast %c10_i32_65 : i32 to vector<2x10x10xi32>
    %323 = arith.select %321, %187, %322 : vector<2x10x10xi1>, vector<2x10x10xi32>
    %cst_66 = arith.constant dense<2147483647> : vector<2x10xi32>
    %324 = vector.multi_reduction <minsi>, %323, %cst_66 [2] : vector<2x10x10xi32> to vector<2x10xi32>
    %c4_i32_67 = arith.constant 4 : i32
    %325 = vector.broadcast %c4_i32_67 : i32 to vector<2x1xi32>
    %326 = arith.cmpi sgt, %185, %325 : vector<2x1xi32>
    %327 = arith.extui %326 : vector<2x1xi1> to vector<2x1xi32>
    %328 = arith.sitofp %327 : vector<2x1xi32> to vector<2x1xf32>
    %c5_i32 = arith.constant 5 : i32
    %329 = vector.broadcast %c5_i32 : i32 to vector<2x1xi32>
    %330 = arith.cmpi eq, %185, %329 : vector<2x1xi32>
    %331 = arith.extui %330 : vector<2x1xi1> to vector<2x1xi32>
    %332 = arith.sitofp %331 : vector<2x1xi32> to vector<2x1xf32>
    %333 = arith.addf %318, %314 : vector<2x10xf32>
    %334 = vector.broadcast %328 : vector<2x1xf32> to vector<2x10xf32>
    %335 = arith.mulf %334, %333 : vector<2x10xf32>
    %cst_68 = arith.constant 1.000000e+00 : f32
    %336 = vector.broadcast %cst_68 : f32 to vector<2x1xf32>
    %337 = arith.subf %336, %328 : vector<2x1xf32>
    %338 = vector.broadcast %337 : vector<2x1xf32> to vector<2x10xf32>
    %339 = arith.mulf %338, %313 : vector<2x10xf32>
    %340 = arith.addf %335, %339 : vector<2x10xf32>
    %341 = vector.broadcast %332 : vector<2x1xf32> to vector<2x10xf32>
    %342 = vector.broadcast %6 : vector<1x10xf32> to vector<2x10xf32>
    %343 = arith.mulf %341, %342 : vector<2x10xf32>
    %344 = arith.addf %340, %343 : vector<2x10xf32>
    %345 = vector.extract_strided_slice %184 {offsets = [10, 0], sizes = [2, 10], strides = [1, 1]} : vector<16x10xf32> to vector<2x10xf32>
    %346 = vector.shape_cast %344 : vector<2x10xf32> to vector<2x1x10xf32>
    %347 = vector.broadcast %346 : vector<2x1x10xf32> to vector<2x10x10xf32>
    %348 = arith.addf %347, %190 : vector<2x10x10xf32>
    %cst_69 = arith.constant dense<0xFF800000> : vector<2x10xf32>
    %349 = vector.multi_reduction <maximumf>, %348, %cst_69 [2] : vector<2x10x10xf32> to vector<2x10xf32>
    %350 = vector.shape_cast %349 : vector<2x10xf32> to vector<2x10x1xf32>
    %351 = vector.broadcast %350 : vector<2x10x1xf32> to vector<2x10x10xf32>
    %352 = arith.cmpf oeq, %348, %351 : vector<2x10x10xf32>
    %c10_i32_70 = arith.constant 10 : i32
    %353 = vector.broadcast %c10_i32_70 : i32 to vector<2x10x10xi32>
    %354 = arith.select %352, %187, %353 : vector<2x10x10xi1>, vector<2x10x10xi32>
    %cst_71 = arith.constant dense<2147483647> : vector<2x10xi32>
    %355 = vector.multi_reduction <minsi>, %354, %cst_71 [2] : vector<2x10x10xi32> to vector<2x10xi32>
    %c5_i32_72 = arith.constant 5 : i32
    %356 = vector.broadcast %c5_i32_72 : i32 to vector<2x1xi32>
    %357 = arith.cmpi sgt, %185, %356 : vector<2x1xi32>
    %358 = arith.extui %357 : vector<2x1xi1> to vector<2x1xi32>
    %359 = arith.sitofp %358 : vector<2x1xi32> to vector<2x1xf32>
    %c6_i32 = arith.constant 6 : i32
    %360 = vector.broadcast %c6_i32 : i32 to vector<2x1xi32>
    %361 = arith.cmpi eq, %185, %360 : vector<2x1xi32>
    %362 = arith.extui %361 : vector<2x1xi1> to vector<2x1xi32>
    %363 = arith.sitofp %362 : vector<2x1xi32> to vector<2x1xf32>
    %364 = arith.addf %349, %345 : vector<2x10xf32>
    %365 = vector.broadcast %359 : vector<2x1xf32> to vector<2x10xf32>
    %366 = arith.mulf %365, %364 : vector<2x10xf32>
    %cst_73 = arith.constant 1.000000e+00 : f32
    %367 = vector.broadcast %cst_73 : f32 to vector<2x1xf32>
    %368 = arith.subf %367, %359 : vector<2x1xf32>
    %369 = vector.broadcast %368 : vector<2x1xf32> to vector<2x10xf32>
    %370 = arith.mulf %369, %344 : vector<2x10xf32>
    %371 = arith.addf %366, %370 : vector<2x10xf32>
    %372 = vector.broadcast %363 : vector<2x1xf32> to vector<2x10xf32>
    %373 = vector.broadcast %6 : vector<1x10xf32> to vector<2x10xf32>
    %374 = arith.mulf %372, %373 : vector<2x10xf32>
    %375 = arith.addf %371, %374 : vector<2x10xf32>
    %376 = vector.extract_strided_slice %184 {offsets = [12, 0], sizes = [2, 10], strides = [1, 1]} : vector<16x10xf32> to vector<2x10xf32>
    %377 = vector.shape_cast %375 : vector<2x10xf32> to vector<2x1x10xf32>
    %378 = vector.broadcast %377 : vector<2x1x10xf32> to vector<2x10x10xf32>
    %379 = arith.addf %378, %190 : vector<2x10x10xf32>
    %cst_74 = arith.constant dense<0xFF800000> : vector<2x10xf32>
    %380 = vector.multi_reduction <maximumf>, %379, %cst_74 [2] : vector<2x10x10xf32> to vector<2x10xf32>
    %381 = vector.shape_cast %380 : vector<2x10xf32> to vector<2x10x1xf32>
    %382 = vector.broadcast %381 : vector<2x10x1xf32> to vector<2x10x10xf32>
    %383 = arith.cmpf oeq, %379, %382 : vector<2x10x10xf32>
    %c10_i32_75 = arith.constant 10 : i32
    %384 = vector.broadcast %c10_i32_75 : i32 to vector<2x10x10xi32>
    %385 = arith.select %383, %187, %384 : vector<2x10x10xi1>, vector<2x10x10xi32>
    %cst_76 = arith.constant dense<2147483647> : vector<2x10xi32>
    %386 = vector.multi_reduction <minsi>, %385, %cst_76 [2] : vector<2x10x10xi32> to vector<2x10xi32>
    %c6_i32_77 = arith.constant 6 : i32
    %387 = vector.broadcast %c6_i32_77 : i32 to vector<2x1xi32>
    %388 = arith.cmpi sgt, %185, %387 : vector<2x1xi32>
    %389 = arith.extui %388 : vector<2x1xi1> to vector<2x1xi32>
    %390 = arith.sitofp %389 : vector<2x1xi32> to vector<2x1xf32>
    %c7_i32 = arith.constant 7 : i32
    %391 = vector.broadcast %c7_i32 : i32 to vector<2x1xi32>
    %392 = arith.cmpi eq, %185, %391 : vector<2x1xi32>
    %393 = arith.extui %392 : vector<2x1xi1> to vector<2x1xi32>
    %394 = arith.sitofp %393 : vector<2x1xi32> to vector<2x1xf32>
    %395 = arith.addf %380, %376 : vector<2x10xf32>
    %396 = vector.broadcast %390 : vector<2x1xf32> to vector<2x10xf32>
    %397 = arith.mulf %396, %395 : vector<2x10xf32>
    %cst_78 = arith.constant 1.000000e+00 : f32
    %398 = vector.broadcast %cst_78 : f32 to vector<2x1xf32>
    %399 = arith.subf %398, %390 : vector<2x1xf32>
    %400 = vector.broadcast %399 : vector<2x1xf32> to vector<2x10xf32>
    %401 = arith.mulf %400, %375 : vector<2x10xf32>
    %402 = arith.addf %397, %401 : vector<2x10xf32>
    %403 = vector.broadcast %394 : vector<2x1xf32> to vector<2x10xf32>
    %404 = vector.broadcast %6 : vector<1x10xf32> to vector<2x10xf32>
    %405 = arith.mulf %403, %404 : vector<2x10xf32>
    %406 = arith.addf %402, %405 : vector<2x10xf32>
    %407 = vector.extract_strided_slice %184 {offsets = [14, 0], sizes = [2, 10], strides = [1, 1]} : vector<16x10xf32> to vector<2x10xf32>
    %408 = vector.shape_cast %406 : vector<2x10xf32> to vector<2x1x10xf32>
    %409 = vector.broadcast %408 : vector<2x1x10xf32> to vector<2x10x10xf32>
    %410 = arith.addf %409, %190 : vector<2x10x10xf32>
    %cst_79 = arith.constant dense<0xFF800000> : vector<2x10xf32>
    %411 = vector.multi_reduction <maximumf>, %410, %cst_79 [2] : vector<2x10x10xf32> to vector<2x10xf32>
    %412 = vector.shape_cast %411 : vector<2x10xf32> to vector<2x10x1xf32>
    %413 = vector.broadcast %412 : vector<2x10x1xf32> to vector<2x10x10xf32>
    %414 = arith.cmpf oeq, %410, %413 : vector<2x10x10xf32>
    %c10_i32_80 = arith.constant 10 : i32
    %415 = vector.broadcast %c10_i32_80 : i32 to vector<2x10x10xi32>
    %416 = arith.select %414, %187, %415 : vector<2x10x10xi1>, vector<2x10x10xi32>
    %cst_81 = arith.constant dense<2147483647> : vector<2x10xi32>
    %417 = vector.multi_reduction <minsi>, %416, %cst_81 [2] : vector<2x10x10xi32> to vector<2x10xi32>
    %c7_i32_82 = arith.constant 7 : i32
    %418 = vector.broadcast %c7_i32_82 : i32 to vector<2x1xi32>
    %419 = arith.cmpi sgt, %185, %418 : vector<2x1xi32>
    %420 = arith.extui %419 : vector<2x1xi1> to vector<2x1xi32>
    %421 = arith.sitofp %420 : vector<2x1xi32> to vector<2x1xf32>
    %c8_i32_83 = arith.constant 8 : i32
    %422 = vector.broadcast %c8_i32_83 : i32 to vector<2x1xi32>
    %423 = arith.cmpi eq, %185, %422 : vector<2x1xi32>
    %424 = arith.extui %423 : vector<2x1xi1> to vector<2x1xi32>
    %425 = arith.sitofp %424 : vector<2x1xi32> to vector<2x1xf32>
    %426 = arith.addf %411, %407 : vector<2x10xf32>
    %427 = vector.broadcast %421 : vector<2x1xf32> to vector<2x10xf32>
    %428 = arith.mulf %427, %426 : vector<2x10xf32>
    %cst_84 = arith.constant 1.000000e+00 : f32
    %429 = vector.broadcast %cst_84 : f32 to vector<2x1xf32>
    %430 = arith.subf %429, %421 : vector<2x1xf32>
    %431 = vector.broadcast %430 : vector<2x1xf32> to vector<2x10xf32>
    %432 = arith.mulf %431, %406 : vector<2x10xf32>
    %433 = arith.addf %428, %432 : vector<2x10xf32>
    %434 = vector.broadcast %425 : vector<2x1xf32> to vector<2x10xf32>
    %435 = vector.broadcast %6 : vector<1x10xf32> to vector<2x10xf32>
    %436 = arith.mulf %434, %435 : vector<2x10xf32>
    %437 = arith.addf %433, %436 : vector<2x10xf32>
    %cst_85 = arith.constant dense<0xFF800000> : vector<2xf32>
    %438 = vector.multi_reduction <maximumf>, %437, %cst_85 [1] : vector<2x10xf32> to vector<2xf32>
    %439 = vector.shape_cast %438 : vector<2xf32> to vector<2x1xf32>
    %440 = vector.broadcast %439 : vector<2x1xf32> to vector<2x10xf32>
    %441 = arith.cmpf oeq, %437, %440 : vector<2x10xf32>
    %c10_i32_86 = arith.constant 10 : i32
    %442 = vector.broadcast %c10_i32_86 : i32 to vector<2x10xi32>
    %443 = arith.select %441, %186, %442 : vector<2x10xi1>, vector<2x10xi32>
    %cst_87 = arith.constant dense<2147483647> : vector<2xi32>
    %444 = vector.multi_reduction <minsi>, %443, %cst_87 [1] : vector<2x10xi32> to vector<2xi32>
    %445 = vector.shape_cast %444 : vector<2xi32> to vector<2x1xi32>
    %446 = vector.broadcast %445 : vector<2x1xi32> to vector<2x10xi32>
    %447 = arith.cmpi eq, %186, %446 : vector<2x10xi32>
    %c10_i32_88 = arith.constant 10 : i32
    %448 = vector.broadcast %c10_i32_88 : i32 to vector<2x10xi32>
    %449 = arith.select %447, %417, %448 : vector<2x10xi1>, vector<2x10xi32>
    %cst_89 = arith.constant dense<2147483647> : vector<2xi32>
    %450 = vector.multi_reduction <minsi>, %449, %cst_89 [1] : vector<2x10xi32> to vector<2xi32>
    %451 = vector.shape_cast %450 : vector<2xi32> to vector<2x1xi32>
    %452 = vector.broadcast %451 : vector<2x1xi32> to vector<2x10xi32>
    %453 = arith.cmpi eq, %186, %452 : vector<2x10xi32>
    %c10_i32_90 = arith.constant 10 : i32
    %454 = vector.broadcast %c10_i32_90 : i32 to vector<2x10xi32>
    %455 = arith.select %453, %386, %454 : vector<2x10xi1>, vector<2x10xi32>
    %cst_91 = arith.constant dense<2147483647> : vector<2xi32>
    %456 = vector.multi_reduction <minsi>, %455, %cst_91 [1] : vector<2x10xi32> to vector<2xi32>
    %457 = vector.shape_cast %456 : vector<2xi32> to vector<2x1xi32>
    %458 = vector.broadcast %457 : vector<2x1xi32> to vector<2x10xi32>
    %459 = arith.cmpi eq, %186, %458 : vector<2x10xi32>
    %c10_i32_92 = arith.constant 10 : i32
    %460 = vector.broadcast %c10_i32_92 : i32 to vector<2x10xi32>
    %461 = arith.select %459, %355, %460 : vector<2x10xi1>, vector<2x10xi32>
    %cst_93 = arith.constant dense<2147483647> : vector<2xi32>
    %462 = vector.multi_reduction <minsi>, %461, %cst_93 [1] : vector<2x10xi32> to vector<2xi32>
    %463 = vector.shape_cast %462 : vector<2xi32> to vector<2x1xi32>
    %464 = vector.broadcast %463 : vector<2x1xi32> to vector<2x10xi32>
    %465 = arith.cmpi eq, %186, %464 : vector<2x10xi32>
    %c10_i32_94 = arith.constant 10 : i32
    %466 = vector.broadcast %c10_i32_94 : i32 to vector<2x10xi32>
    %467 = arith.select %465, %324, %466 : vector<2x10xi1>, vector<2x10xi32>
    %cst_95 = arith.constant dense<2147483647> : vector<2xi32>
    %468 = vector.multi_reduction <minsi>, %467, %cst_95 [1] : vector<2x10xi32> to vector<2xi32>
    %469 = vector.shape_cast %468 : vector<2xi32> to vector<2x1xi32>
    %470 = vector.broadcast %469 : vector<2x1xi32> to vector<2x10xi32>
    %471 = arith.cmpi eq, %186, %470 : vector<2x10xi32>
    %c10_i32_96 = arith.constant 10 : i32
    %472 = vector.broadcast %c10_i32_96 : i32 to vector<2x10xi32>
    %473 = arith.select %471, %293, %472 : vector<2x10xi1>, vector<2x10xi32>
    %cst_97 = arith.constant dense<2147483647> : vector<2xi32>
    %474 = vector.multi_reduction <minsi>, %473, %cst_97 [1] : vector<2x10xi32> to vector<2xi32>
    %475 = vector.shape_cast %474 : vector<2xi32> to vector<2x1xi32>
    %476 = vector.broadcast %475 : vector<2x1xi32> to vector<2x10xi32>
    %477 = arith.cmpi eq, %186, %476 : vector<2x10xi32>
    %c10_i32_98 = arith.constant 10 : i32
    %478 = vector.broadcast %c10_i32_98 : i32 to vector<2x10xi32>
    %479 = arith.select %477, %262, %478 : vector<2x10xi1>, vector<2x10xi32>
    %cst_99 = arith.constant dense<2147483647> : vector<2xi32>
    %480 = vector.multi_reduction <minsi>, %479, %cst_99 [1] : vector<2x10xi32> to vector<2xi32>
    %481 = vector.shape_cast %480 : vector<2xi32> to vector<2x1xi32>
    %482 = vector.broadcast %481 : vector<2x1xi32> to vector<2x10xi32>
    %483 = arith.cmpi eq, %186, %482 : vector<2x10xi32>
    %c10_i32_100 = arith.constant 10 : i32
    %484 = vector.broadcast %c10_i32_100 : i32 to vector<2x10xi32>
    %485 = arith.select %483, %231, %484 : vector<2x10xi1>, vector<2x10xi32>
    %cst_101 = arith.constant dense<2147483647> : vector<2xi32>
    %486 = vector.multi_reduction <minsi>, %485, %cst_101 [1] : vector<2x10xi32> to vector<2xi32>
    %487 = vector.shape_cast %486 : vector<2xi32> to vector<2x1xi32>
    %488 = tpu.iota {dimensions = array<i32: 1>} : vector<2x128xi32>
    %c0_i32_102 = arith.constant 0 : i32
    %489 = vector.broadcast %c0_i32_102 : i32 to vector<2x128xi32>
    %c0_i32_103 = arith.constant 0 : i32
    %490 = vector.broadcast %c0_i32_103 : i32 to vector<2x128xi32>
    %491 = arith.cmpi eq, %488, %490 : vector<2x128xi32>
    %492 = vector.shape_cast %487 : vector<2x1xi32> to vector<2x1xi32>
    %493 = vector.broadcast %492 : vector<2x1xi32> to vector<2x128xi32>
    %494 = arith.select %491, %493, %489 : vector<2x128xi1>, vector<2x128xi32>
    %c1_i32_104 = arith.constant 1 : i32
    %495 = vector.broadcast %c1_i32_104 : i32 to vector<2x128xi32>
    %496 = arith.cmpi eq, %488, %495 : vector<2x128xi32>
    %497 = vector.shape_cast %481 : vector<2x1xi32> to vector<2x1xi32>
    %498 = vector.broadcast %497 : vector<2x1xi32> to vector<2x128xi32>
    %499 = arith.select %496, %498, %494 : vector<2x128xi1>, vector<2x128xi32>
    %c2_i32_105 = arith.constant 2 : i32
    %500 = vector.broadcast %c2_i32_105 : i32 to vector<2x128xi32>
    %501 = arith.cmpi eq, %488, %500 : vector<2x128xi32>
    %502 = vector.shape_cast %475 : vector<2x1xi32> to vector<2x1xi32>
    %503 = vector.broadcast %502 : vector<2x1xi32> to vector<2x128xi32>
    %504 = arith.select %501, %503, %499 : vector<2x128xi1>, vector<2x128xi32>
    %c3_i32_106 = arith.constant 3 : i32
    %505 = vector.broadcast %c3_i32_106 : i32 to vector<2x128xi32>
    %506 = arith.cmpi eq, %488, %505 : vector<2x128xi32>
    %507 = vector.shape_cast %469 : vector<2x1xi32> to vector<2x1xi32>
    %508 = vector.broadcast %507 : vector<2x1xi32> to vector<2x128xi32>
    %509 = arith.select %506, %508, %504 : vector<2x128xi1>, vector<2x128xi32>
    %c4_i32_107 = arith.constant 4 : i32
    %510 = vector.broadcast %c4_i32_107 : i32 to vector<2x128xi32>
    %511 = arith.cmpi eq, %488, %510 : vector<2x128xi32>
    %512 = vector.shape_cast %463 : vector<2x1xi32> to vector<2x1xi32>
    %513 = vector.broadcast %512 : vector<2x1xi32> to vector<2x128xi32>
    %514 = arith.select %511, %513, %509 : vector<2x128xi1>, vector<2x128xi32>
    %c5_i32_108 = arith.constant 5 : i32
    %515 = vector.broadcast %c5_i32_108 : i32 to vector<2x128xi32>
    %516 = arith.cmpi eq, %488, %515 : vector<2x128xi32>
    %517 = vector.shape_cast %457 : vector<2x1xi32> to vector<2x1xi32>
    %518 = vector.broadcast %517 : vector<2x1xi32> to vector<2x128xi32>
    %519 = arith.select %516, %518, %514 : vector<2x128xi1>, vector<2x128xi32>
    %c6_i32_109 = arith.constant 6 : i32
    %520 = vector.broadcast %c6_i32_109 : i32 to vector<2x128xi32>
    %521 = arith.cmpi eq, %488, %520 : vector<2x128xi32>
    %522 = vector.shape_cast %451 : vector<2x1xi32> to vector<2x1xi32>
    %523 = vector.broadcast %522 : vector<2x1xi32> to vector<2x128xi32>
    %524 = arith.select %521, %523, %519 : vector<2x128xi1>, vector<2x128xi32>
    %c7_i32_110 = arith.constant 7 : i32
    %525 = vector.broadcast %c7_i32_110 : i32 to vector<2x128xi32>
    %526 = arith.cmpi eq, %488, %525 : vector<2x128xi32>
    %527 = vector.shape_cast %445 : vector<2x1xi32> to vector<2x1xi32>
    %528 = vector.broadcast %527 : vector<2x1xi32> to vector<2x128xi32>
    %529 = arith.select %526, %528, %524 : vector<2x128xi1>, vector<2x128xi32>
    %c0_111 = arith.constant 0 : index
    %c0_112 = arith.constant 0 : index
    %530 = vector.load %arg3[%c0_111, %c0_112] : memref<2x128xi32, #tpu.memory_space<vmem>>, vector<2x128xi32>
    tpu.vector_store %arg3[%c0_111, %c0_112], %529 {strides = array<i32>} : memref<2x128xi32, #tpu.memory_space<vmem>>, vector<2x128xi32>,
    return
  }
}

</mosaic_0001>

<llo_original>
// kernel: forward.1
$region0: #{forward.1}
  #allocation0 [shape = 'u32[]', space=smem, size = 0x4, offset = 0x4, fixed_abs, tag = 'smem constant byte address 0x4 - core index']
  #allocation1 [shape = 'u32[72,128]{1,0:T(1,128)}', space=vmem, size = 0x9000, scoped, tag = 'internal scratch']
  %s0 = inlined_call_operand.vmem [shape: f32[16,32], index: 0, kind: input, shape index: {}]
  %s1 = inlined_call_operand.vmem [shape: s32[2,1], index: 1, kind: input, shape index: {}]
  %s2 = inlined_call_operand.vmem [shape: f32[109,128], index: 2, kind: input, shape index: {}]
  %s3 = inlined_call_operand.vmem [shape: s32[2,128], index: 3, kind: output, shape index: {}]
  %s4 = sld [smem:[#allocation0]]
  $region22: #{forward.1} parent=0
    _
  %s6 = ssub.s32 1, %s4
  %s7 = scalar_select 0, %s6, %s4
  // Predicated region
  $region2: #{forward.1} parent=0 // pred_check
    _
  $region3: #{forward.1} parent=0 // pred_check_branch
    %9 = sbr.rel (0) target = $region5
  $region4: #{forward.1} parent=0 // pred_region
    _
  $region5: #{forward.1} parent=0 // pred_fallthru
    _
  // Predicated region
  $region6: #{forward.1} parent=0 // pred_check
    _
  $region7: #{forward.1} parent=0 // pred_check_branch
    %11 = sbr.rel (0) target = $region9
  $region8: #{forward.1} parent=0 // pred_region
    _
  $region9: #{forward.1} parent=0 // pred_fallthru
    _
  // Predicated region
  $region10: #{forward.1} parent=0 // pred_check
    _
  $region11: #{forward.1} parent=0 // pred_check_branch
    %13 = sbr.rel (0) target = $region13
  $region12: #{forward.1} parent=0 // pred_region
    _
  $region13: #{forward.1} parent=0 // pred_fallthru
    _
  %v14 = vld [vmem:[%s2] sm:$0xff]
  %v15 = vld [vmem:[%s2 + $0x8] sm:$0xff]
  %v16 = vld [vmem:[%s2 + $0x10] sm:$0xff]
  %v17 = vld [vmem:[%s2 + $0x18] sm:$0xff]
  %v18 = vld [vmem:[%s2 + $0x20] sm:$0xff]
  %v19 = vld [vmem:[%s2 + $0x28] sm:$0xff]
  %v20 = vld [vmem:[%s2 + $0x30] sm:$0xff]
  %v21 = vld [vmem:[%s2 + $0x38] sm:$0xff]
  %v22 = vld [vmem:[%s2 + $0x40] sm:$0x1]
  %v23 = vld [vmem:[%s2 + $0x41] sm:$0xff]
  %v24 = vld [vmem:[%s2 + $0x49] sm:$0xff]
  %v25 = vld [vmem:[%s2 + $0x51] sm:$0xff]
  %v26 = vld [vmem:[%s2 + $0x59] sm:$0xff]
  %v27 = vld [vmem:[%s2 + $0x61] sm:$0x1]
  %v28 = vld [vmem:[%s2 + $0x62] sm:$0xff]
  %v29 = vld [vmem:[%s2 + $0x6a] sm:$0x3]
  %v30 = vld [vmem:[%s2 + $0x6c] sm:$0x1]
  %v31 = vld [vmem:[%s0] sm:$0xff]
  %v32 = vld [vmem:[%s0 + $0x8] sm:$0xff]
  %v33 = vperm.slane %v22, 0
  %vm34 = vcmask 261120
  %v36 = vsel %vm34, %v31, 0
  %v39 = vsel %vm34, %v32, 0
  %41 = vmatpush.msra.mxu0 0.0
  %42 = vmatpush.msra.mxu0 0.0
  %43 = vmatpush.msra.mxu0 0.0
  %44 = vmatpush.msra.mxu0 0.0
  %45 = vmatpush.msra.mxu0 0.0
  %46 = vmatpush.msra.mxu0 0.0
  %47 = vmatpush.msra.mxu0 0.0
  %48 = vmatpush.msra.mxu0 0.0
  %49 = vmatpush.msra.mxu0 0.0
  %50 = vmatpush.msra.mxu0 0.0
  %51 = vmatpush.msra.mxu0 0.0
  %52 = vmatpush.msra.mxu0 0.0
  %53 = vmatpush.msra.mxu0 %v17
  %54 = vmatpush.msra.mxu0 %v16
  %55 = vmatpush.msra.mxu0 %v15
  %56 = vmatpush.msra.mxu0 %v14
  %57 = vmatmul.f32.gmra.mxu0 %v36
  %v58 = vpop.f32.mrf.mxu0
  %v59 = vadd.f32 %v33, %v58
  %60 = vmatmul.f32.gmra.mxu0 %v39
  %v61 = vpop.f32.mrf.mxu0
  %v62 = vadd.f32 %v33, %v61
  %63 = vdwg.mxu0
  %v65 = vsel %vm34, 0.0, 0
  %67 = vmatpush.msra.mxu0 0.0
  %68 = vmatpush.msra.mxu0 0.0
  %69 = vmatpush.msra.mxu0 0.0
  %70 = vmatpush.msra.mxu0 0.0
  %71 = vmatpush.msra.mxu0 0.0
  %72 = vmatpush.msra.mxu0 0.0
  %73 = vmatpush.msra.mxu0 0.0
  %74 = vmatpush.msra.mxu0 0.0
  %75 = vmatpush.msra.mxu0 0.0
  %76 = vmatpush.msra.mxu0 0.0
  %77 = vmatpush.msra.mxu0 0.0
  %78 = vmatpush.msra.mxu0 0.0
  %79 = vmatpush.msra.mxu0 %v21
  %80 = vmatpush.msra.mxu0 %v20
  %81 = vmatpush.msra.mxu0 %v19
  %82 = vmatpush.msra.mxu0 %v18
  %83 = vmatmul.f32.gmra.mxu0 %v65
  %v84 = vpop.f32.mrf.mxu0
  %v85 = vadd.f32 0.0, %v84
  %86 = vdwg.mxu0
  %v87 = vadd.f32 %v59, %v85
  %v88 = vxor.u32 %v87, 2147483648
  %v89 = vmul.f32 %v88, 1.442695
  %v90 = vpow.pop %v89
  %v91 = vadd.f32 %v90, 1.0
  %v92 = vrcp.pop %v91
  %v93 = vmul.f32 %v91, %v92
  %v94 = vsub.f32 1.0, %v93
  %v95 = vmul.f32 %v92, %v94
  %v96 = vadd.f32 %v92, %v95
  %vm97 = vweird.f32 %v91
  %vm98 = vweird.f32 %v92
  %vm99 = vmor %vm97, %vm98
  %v100 = vsel %vm99, %v92, %v96
  %v101 = vand.u32 2147483647, %v91
  %vm102 = vcmp.eq.f32.partialorder %v101, 8.507059e+37
  %v103 = vand.u32 %v91, 2147483648
  %v104 = vor.u32 1.1754944e-38, %v103
  %v105 = vsel %vm102, %v104, %v100
  %v106 = vmul.f32 1.0, %v105
  %v107 = vmul.f32 %v106, 2.0
  %v108 = vsub.f32 %v107, 1.0
  %v109 = vmul.f32 %v106, 0.0
  %111 = vrot.lane.b32.xlu0 %v108, 64
  %v112 = vpop.permute.xlu0 %111
  %v114 = vmul.f32 %v106, %v112
  %116 = vrot.lane.b32.xlu0 %v114, 32
  %v117 = vpop.permute.xlu0 %116
  %v119 = vadd.f32 %v109, %v117
  %v120 = vtanh.pop %v119
  %122 = vrot.lane.b32.xlu0 %v120, 64
  %v123 = vpop.permute.xlu0 %122
  %v125 = vmul.f32 %v106, %v123
  %127 = vrot.lane.b32.xlu0 %v125, 32
  %v128 = vpop.permute.xlu0 %127
  %v129 = vsel %vm34, %v128, 0
  %131 = vmatpush.msra.mxu0 0.0
  %132 = vmatpush.msra.mxu0 0.0
  %133 = vmatpush.msra.mxu0 0.0
  %134 = vmatpush.msra.mxu0 0.0
  %135 = vmatpush.msra.mxu0 0.0
  %136 = vmatpush.msra.mxu0 0.0
  %137 = vmatpush.msra.mxu0 0.0
  %138 = vmatpush.msra.mxu0 0.0
  %139 = vmatpush.msra.mxu0 0.0
  %140 = vmatpush.msra.mxu0 0.0
  %141 = vmatpush.msra.mxu0 0.0
  %142 = vmatpush.msra.mxu0 0.0
  %143 = vmatpush.msra.mxu0 %v21
  %144 = vmatpush.msra.mxu0 %v20
  %145 = vmatpush.msra.mxu0 %v19
  %146 = vmatpush.msra.mxu0 %v18
  %147 = vmatmul.f32.gmra.mxu0 %v129
  %v148 = vpop.f32.mrf.mxu0
  %v149 = vadd.f32 0.0, %v148
  %150 = vdwg.mxu0
  %v152 = vrot.slane %v149, 6
  %v154 = vadd.f32 %v59, %v152
  %v155 = vxor.u32 %v154, 2147483648
  %v156 = vmul.f32 %v155, 1.442695
  %v157 = vpow.pop %v156
  %v158 = vadd.f32 %v157, 1.0
  %v159 = vrcp.pop %v158
  %v160 = vmul.f32 %v158, %v159
  %v161 = vsub.f32 1.0, %v160
  %v162 = vmul.f32 %v159, %v161
  %v163 = vadd.f32 %v159, %v162
  %vm164 = vweird.f32 %v158
  %vm165 = vweird.f32 %v159
  %vm166 = vmor %vm164, %vm165
  %v167 = vsel %vm166, %v159, %v163
  %v168 = vand.u32 2147483647, %v158
  %vm169 = vcmp.eq.f32.partialorder %v168, 8.507059e+37
  %v170 = vand.u32 %v158, 2147483648
  %v171 = vor.u32 1.1754944e-38, %v170
  %v172 = vsel %vm169, %v171, %v167
  %v173 = vmul.f32 1.0, %v172
  %v174 = vmul.f32 %v173, 2.0
  %v175 = vsub.f32 %v174, 1.0
  %v177 = vrot.slane %v119, 6
  %v179 = vmul.f32 %v173, %v177
  %181 = vrot.lane.b32.xlu0 %v175, 64
  %v182 = vpop.permute.xlu0 %181
  %v184 = vmul.f32 %v173, %v182
  %186 = vrot.lane.b32.xlu0 %v184, 32
  %v187 = vpop.permute.xlu0 %186
  %v189 = vadd.f32 %v179, %v187
  %v190 = vtanh.pop %v189
  %192 = vrot.lane.b32.xlu0 %v190, 64
  %v193 = vpop.permute.xlu0 %192
  %v195 = vmul.f32 %v173, %v193
  %v197 = vrot.slane %v195, 2
  %198 = vrot.lane.b32.xlu0 %v197, 32
  %v199 = vpop.permute.xlu0 %198
  %v200 = vsel %vm34, %v199, 0
  %202 = vmatpush.msra.mxu0 0.0
  %203 = vmatpush.msra.mxu0 0.0
  %204 = vmatpush.msra.mxu0 0.0
  %205 = vmatpush.msra.mxu0 0.0
  %206 = vmatpush.msra.mxu0 0.0
  %207 = vmatpush.msra.mxu0 0.0
  %208 = vmatpush.msra.mxu0 0.0
  %209 = vmatpush.msra.mxu0 0.0
  %210 = vmatpush.msra.mxu0 0.0
  %211 = vmatpush.msra.mxu0 0.0
  %212 = vmatpush.msra.mxu0 0.0
  %213 = vmatpush.msra.mxu0 0.0
  %214 = vmatpush.msra.mxu0 %v21
  %215 = vmatpush.msra.mxu0 %v20
  %216 = vmatpush.msra.mxu0 %v19
  %217 = vmatpush.msra.mxu0 %v18
  %218 = vmatmul.f32.gmra.mxu0 %v200
  %v219 = vpop.f32.mrf.mxu0
  %v220 = vadd.f32 0.0, %v219
  %221 = vdwg.mxu0
  %v223 = vrot.slane %v220, 4
  %v225 = vadd.f32 %v59, %v223
  %v226 = vxor.u32 %v225, 2147483648
  %v227 = vmul.f32 %v226, 1.442695
  %v228 = vpow.pop %v227
  %v229 = vadd.f32 %v228, 1.0
  %v230 = vrcp.pop %v229
  %v231 = vmul.f32 %v229, %v230
  %v232 = vsub.f32 1.0, %v231
  %v233 = vmul.f32 %v230, %v232
  %v234 = vadd.f32 %v230, %v233
  %vm235 = vweird.f32 %v229
  %vm236 = vweird.f32 %v230
  %vm237 = vmor %vm235, %vm236
  %v238 = vsel %vm237, %v230, %v234
  %v239 = vand.u32 2147483647, %v229
  %vm240 = vcmp.eq.f32.partialorder %v239, 8.507059e+37
  %v241 = vand.u32 %v229, 2147483648
  %v242 = vor.u32 1.1754944e-38, %v241
  %v243 = vsel %vm240, %v242, %v238
  %v244 = vmul.f32 1.0, %v243
  %v245 = vmul.f32 %v244, 2.0
  %v246 = vsub.f32 %v245, 1.0
  %v248 = vrot.slane %v189, 6
  %v250 = vmul.f32 %v244, %v248
  %252 = vrot.lane.b32.xlu0 %v246, 64
  %v253 = vpop.permute.xlu0 %252
  %v255 = vmul.f32 %v244, %v253
  %257 = vrot.lane.b32.xlu0 %v255, 32
  %v258 = vpop.permute.xlu0 %257
  %v260 = vadd.f32 %v250, %v258
  %v261 = vtanh.pop %v260
  %263 = vrot.lane.b32.xlu0 %v261, 64
  %v264 = vpop.permute.xlu0 %263
  %v266 = vmul.f32 %v244, %v264
  %v268 = vrot.slane %v266, 4
  %269 = vrot.lane.b32.xlu0 %v268, 32
  %v270 = vpop.permute.xlu0 %269
  %v271 = vsel %vm34, %v270, 0
  %273 = vmatpush.msra.mxu0 0.0
  %274 = vmatpush.msra.mxu0 0.0
  %275 = vmatpush.msra.mxu0 0.0
  %276 = vmatpush.msra.mxu0 0.0
  %277 = vmatpush.msra.mxu0 0.0
  %278 = vmatpush.msra.mxu0 0.0
  %279 = vmatpush.msra.mxu0 0.0
  %280 = vmatpush.msra.mxu0 0.0
  %281 = vmatpush.msra.mxu0 0.0
  %282 = vmatpush.msra.mxu0 0.0
  %283 = vmatpush.msra.mxu0 0.0
  %284 = vmatpush.msra.mxu0 0.0
  %285 = vmatpush.msra.mxu0 %v21
  %286 = vmatpush.msra.mxu0 %v20
  %287 = vmatpush.msra.mxu0 %v19
  %288 = vmatpush.msra.mxu0 %v18
  %289 = vmatmul.f32.gmra.mxu0 %v271
  %v290 = vpop.f32.mrf.mxu0
  %v291 = vadd.f32 0.0, %v290
  %292 = vdwg.mxu0
  %v294 = vrot.slane %v291, 2
  %v296 = vadd.f32 %v59, %v294
  %v297 = vxor.u32 %v296, 2147483648
  %v298 = vmul.f32 %v297, 1.442695
  %v299 = vpow.pop %v298
  %v300 = vadd.f32 %v299, 1.0
  %v301 = vrcp.pop %v300
  %v302 = vmul.f32 %v300, %v301
  %v303 = vsub.f32 1.0, %v302
  %v304 = vmul.f32 %v301, %v303
  %v305 = vadd.f32 %v301, %v304
  %vm306 = vweird.f32 %v300
  %vm307 = vweird.f32 %v301
  %vm308 = vmor %vm306, %vm307
  %v309 = vsel %vm308, %v301, %v305
  %v310 = vand.u32 2147483647, %v300
  %vm311 = vcmp.eq.f32.partialorder %v310, 8.507059e+37
  %v312 = vand.u32 %v300, 2147483648
  %v313 = vor.u32 1.1754944e-38, %v312
  %v314 = vsel %vm311, %v313, %v309
  %v315 = vmul.f32 1.0, %v314
  %v316 = vmul.f32 %v315, 2.0
  %v317 = vsub.f32 %v316, 1.0
  %v319 = vrot.slane %v260, 6
  %v321 = vmul.f32 %v315, %v319
  %323 = vrot.lane.b32.xlu0 %v317, 64
  %v324 = vpop.permute.xlu0 %323
  %v326 = vmul.f32 %v315, %v324
  %328 = vrot.lane.b32.xlu0 %v326, 32
  %v329 = vpop.permute.xlu0 %328
  %v331 = vadd.f32 %v321, %v329
  %v332 = vtanh.pop %v331
  %334 = vrot.lane.b32.xlu0 %v332, 64
  %v335 = vpop.permute.xlu0 %334
  %v337 = vmul.f32 %v315, %v335
  %v339 = vrot.slane %v337, 6
  %340 = vrot.lane.b32.xlu0 %v339, 32
  %v341 = vpop.permute.xlu0 %340
  %v342 = vsel %vm34, %v341, 0
  %344 = vmatpush.msra.mxu0 0.0
  %345 = vmatpush.msra.mxu0 0.0
  %346 = vmatpush.msra.mxu0 0.0
  %347 = vmatpush.msra.mxu0 0.0
  %348 = vmatpush.msra.mxu0 0.0
  %349 = vmatpush.msra.mxu0 0.0
  %350 = vmatpush.msra.mxu0 0.0
  %351 = vmatpush.msra.mxu0 0.0
  %352 = vmatpush.msra.mxu0 0.0
  %353 = vmatpush.msra.mxu0 0.0
  %354 = vmatpush.msra.mxu0 0.0
  %355 = vmatpush.msra.mxu0 0.0
  %356 = vmatpush.msra.mxu0 %v21
  %357 = vmatpush.msra.mxu0 %v20
  %358 = vmatpush.msra.mxu0 %v19
  %359 = vmatpush.msra.mxu0 %v18
  %360 = vmatmul.f32.gmra.mxu0 %v342
  %v361 = vpop.f32.mrf.mxu0
  %v362 = vadd.f32 0.0, %v361
  %363 = vdwg.mxu0
  %v364 = vadd.f32 %v62, %v362
  %v365 = vxor.u32 %v364, 2147483648
  %v366 = vmul.f32 %v365, 1.442695
  %v367 = vpow.pop %v366
  %v368 = vadd.f32 %v367, 1.0
  %v369 = vrcp.pop %v368
  %v370 = vmul.f32 %v368, %v369
  %v371 = vsub.f32 1.0, %v370
  %v372 = vmul.f32 %v369, %v371
  %v373 = vadd.f32 %v369, %v372
  %vm374 = vweird.f32 %v368
  %vm375 = vweird.f32 %v369
  %vm376 = vmor %vm374, %vm375
  %v377 = vsel %vm376, %v369, %v373
  %v378 = vand.u32 2147483647, %v368
  %vm379 = vcmp.eq.f32.partialorder %v378, 8.507059e+37
  %v380 = vand.u32 %v368, 2147483648
  %v381 = vor.u32 1.1754944e-38, %v380
  %v382 = vsel %vm379, %v381, %v377
  %v383 = vmul.f32 1.0, %v382
  %v384 = vmul.f32 %v383, 2.0
  %v385 = vsub.f32 %v384, 1.0
  %v387 = vrot.slane %v331, 6
  %v389 = vmul.f32 %v383, %v387
  %391 = vrot.lane.b32.xlu0 %v385, 64
  %v392 = vpop.permute.xlu0 %391
  %v394 = vmul.f32 %v383, %v392
  %396 = vrot.lane.b32.xlu0 %v394, 32
  %v397 = vpop.permute.xlu0 %396
  %v399 = vadd.f32 %v389, %v397
  %v400 = vtanh.pop %v399
  %402 = vrot.lane.b32.xlu0 %v400, 64
  %v403 = vpop.permute.xlu0 %402
  %v405 = vmul.f32 %v383, %v403
  %407 = vrot.lane.b32.xlu0 %v405, 32
  %v408 = vpop.permute.xlu0 %407
  %v409 = vsel %vm34, %v408, 0
  %411 = vmatpush.msra.mxu0 0.0
  %412 = vmatpush.msra.mxu0 0.0
  %413 = vmatpush.msra.mxu0 0.0
  %414 = vmatpush.msra.mxu0 0.0
  %415 = vmatpush.msra.mxu0 0.0
  %416 = vmatpush.msra.mxu0 0.0
  %417 = vmatpush.msra.mxu0 0.0
  %418 = vmatpush.msra.mxu0 0.0
  %419 = vmatpush.msra.mxu0 0.0
  %420 = vmatpush.msra.mxu0 0.0
  %421 = vmatpush.msra.mxu0 0.0
  %422 = vmatpush.msra.mxu0 0.0
  %423 = vmatpush.msra.mxu0 %v21
  %424 = vmatpush.msra.mxu0 %v20
  %425 = vmatpush.msra.mxu0 %v19
  %426 = vmatpush.msra.mxu0 %v18
  %427 = vmatmul.f32.gmra.mxu0 %v409
  %v428 = vpop.f32.mrf.mxu0
  %v429 = vadd.f32 0.0, %v428
  %430 = vdwg.mxu0
  %v432 = vrot.slane %v429, 6
  %v434 = vadd.f32 %v62, %v432
  %v435 = vxor.u32 %v434, 2147483648
  %v436 = vmul.f32 %v435, 1.442695
  %v437 = vpow.pop %v436
  %v438 = vadd.f32 %v437, 1.0
  %v439 = vrcp.pop %v438
  %v440 = vmul.f32 %v438, %v439
  %v441 = vsub.f32 1.0, %v440
  %v442 = vmul.f32 %v439, %v441
  %v443 = vadd.f32 %v439, %v442
  %vm444 = vweird.f32 %v438
  %vm445 = vweird.f32 %v439
  %vm446 = vmor %vm444, %vm445
  %v447 = vsel %vm446, %v439, %v443
  %v448 = vand.u32 2147483647, %v438
  %vm449 = vcmp.eq.f32.partialorder %v448, 8.507059e+37
  %v450 = vand.u32 %v438, 2147483648
  %v451 = vor.u32 1.1754944e-38, %v450
  %v452 = vsel %vm449, %v451, %v447
  %v453 = vmul.f32 1.0, %v452
  %v454 = vmul.f32 %v453, 2.0
  %v455 = vsub.f32 %v454, 1.0
  %v457 = vrot.slane %v399, 6
  %v459 = vmul.f32 %v453, %v457
  %461 = vrot.lane.b32.xlu0 %v455, 64
  %v462 = vpop.permute.xlu0 %461
  %v464 = vmul.f32 %v453, %v462
  %466 = vrot.lane.b32.xlu0 %v464, 32
  %v467 = vpop.permute.xlu0 %466
  %v469 = vadd.f32 %v459, %v467
  %v470 = vtanh.pop %v469
  %472 = vrot.lane.b32.xlu0 %v470, 64
  %v473 = vpop.permute.xlu0 %472
  %v475 = vmul.f32 %v453, %v473
  %v477 = vrot.slane %v475, 2
  %478 = vrot.lane.b32.xlu0 %v477, 32
  %v479 = vpop.permute.xlu0 %478
  %v480 = vsel %vm34, %v479, 0
  %482 = vmatpush.msra.mxu0 0.0
  %483 = vmatpush.msra.mxu0 0.0
  %484 = vmatpush.msra.mxu0 0.0
  %485 = vmatpush.msra.mxu0 0.0
  %486 = vmatpush.msra.mxu0 0.0
  %487 = vmatpush.msra.mxu0 0.0
  %488 = vmatpush.msra.mxu0 0.0
  %489 = vmatpush.msra.mxu0 0.0
  %490 = vmatpush.msra.mxu0 0.0
  %491 = vmatpush.msra.mxu0 0.0
  %492 = vmatpush.msra.mxu0 0.0
  %493 = vmatpush.msra.mxu0 0.0
  %494 = vmatpush.msra.mxu0 %v21
  %495 = vmatpush.msra.mxu0 %v20
  %496 = vmatpush.msra.mxu0 %v19
  %497 = vmatpush.msra.mxu0 %v18
  %498 = vmatmul.f32.gmra.mxu0 %v480
  %v499 = vpop.f32.mrf.mxu0
  %v500 = vadd.f32 0.0, %v499
  %501 = vdwg.mxu0
  %v503 = vrot.slane %v500, 4
  %v505 = vadd.f32 %v62, %v503
  %v506 = vxor.u32 %v505, 2147483648
  %v507 = vmul.f32 %v506, 1.442695
  %v508 = vpow.pop %v507
  %v509 = vadd.f32 %v508, 1.0
  %v510 = vrcp.pop %v509
  %v511 = vmul.f32 %v509, %v510
  %v512 = vsub.f32 1.0, %v511
  %v513 = vmul.f32 %v510, %v512
  %v514 = vadd.f32 %v510, %v513
  %vm515 = vweird.f32 %v509
  %vm516 = vweird.f32 %v510
  %vm517 = vmor %vm515, %vm516
  %v518 = vsel %vm517, %v510, %v514
  %v519 = vand.u32 2147483647, %v509
  %vm520 = vcmp.eq.f32.partialorder %v519, 8.507059e+37
  %v521 = vand.u32 %v509, 2147483648
  %v522 = vor.u32 1.1754944e-38, %v521
  %v523 = vsel %vm520, %v522, %v518
  %v524 = vmul.f32 1.0, %v523
  %v525 = vmul.f32 %v524, 2.0
  %v526 = vsub.f32 %v525, 1.0
  %v528 = vrot.slane %v469, 6
  %v530 = vmul.f32 %v524, %v528
  %532 = vrot.lane.b32.xlu0 %v526, 64
  %v533 = vpop.permute.xlu0 %532
  %v535 = vmul.f32 %v524, %v533
  %537 = vrot.lane.b32.xlu0 %v535, 32
  %v538 = vpop.permute.xlu0 %537
  %v540 = vadd.f32 %v530, %v538
  %v541 = vtanh.pop %v540
  %543 = vrot.lane.b32.xlu0 %v541, 64
  %v544 = vpop.permute.xlu0 %543
  %v546 = vmul.f32 %v524, %v544
  %v548 = vrot.slane %v546, 4
  %549 = vrot.lane.b32.xlu0 %v548, 32
  %v550 = vpop.permute.xlu0 %549
  %v551 = vsel %vm34, %v550, 0
  %553 = vmatpush.msra.mxu0 0.0
  %554 = vmatpush.msra.mxu0 0.0
  %555 = vmatpush.msra.mxu0 0.0
  %556 = vmatpush.msra.mxu0 0.0
  %557 = vmatpush.msra.mxu0 0.0
  %558 = vmatpush.msra.mxu0 0.0
  %559 = vmatpush.msra.mxu0 0.0
  %560 = vmatpush.msra.mxu0 0.0
  %561 = vmatpush.msra.mxu0 0.0
  %562 = vmatpush.msra.mxu0 0.0
  %563 = vmatpush.msra.mxu0 0.0
  %564 = vmatpush.msra.mxu0 0.0
  %565 = vmatpush.msra.mxu0 %v21
  %566 = vmatpush.msra.mxu0 %v20
  %567 = vmatpush.msra.mxu0 %v19
  %568 = vmatpush.msra.mxu0 %v18
  %569 = vmatmul.f32.gmra.mxu0 %v551
  %v570 = vpop.f32.mrf.mxu0
  %v571 = vadd.f32 0.0, %v570
  %572 = vdwg.mxu0
  %v574 = vrot.slane %v571, 2
  %v576 = vadd.f32 %v62, %v574
  %v577 = vxor.u32 %v576, 2147483648
  %v578 = vmul.f32 %v577, 1.442695
  %v579 = vpow.pop %v578
  %v580 = vadd.f32 %v579, 1.0
  %v581 = vrcp.pop %v580
  %v582 = vmul.f32 %v580, %v581
  %v583 = vsub.f32 1.0, %v582
  %v584 = vmul.f32 %v581, %v583
  %v585 = vadd.f32 %v581, %v584
  %vm586 = vweird.f32 %v580
  %vm587 = vweird.f32 %v581
  %vm588 = vmor %vm586, %vm587
  %v589 = vsel %vm588, %v581, %v585
  %v590 = vand.u32 2147483647, %v580
  %vm591 = vcmp.eq.f32.partialorder %v590, 8.507059e+37
  %v592 = vand.u32 %v580, 2147483648
  %v593 = vor.u32 1.1754944e-38, %v592
  %v594 = vsel %vm591, %v593, %v589
  %v595 = vmul.f32 1.0, %v594
  %v596 = vmul.f32 %v595, 2.0
  %v597 = vsub.f32 %v596, 1.0
  %v599 = vrot.slane %v540, 6
  %v601 = vmul.f32 %v595, %v599
  %603 = vrot.lane.b32.xlu0 %v597, 64
  %v604 = vpop.permute.xlu0 %603
  %v606 = vmul.f32 %v595, %v604
  %608 = vrot.lane.b32.xlu0 %v606, 32
  %v609 = vpop.permute.xlu0 %608
  %v611 = vadd.f32 %v601, %v609
  %v612 = vtanh.pop %v611
  %614 = vrot.lane.b32.xlu0 %v612, 64
  %v615 = vpop.permute.xlu0 %614
  %v617 = vmul.f32 %v595, %v615
  %vm618 = vcmask 1041408
  %v619 = vsel %vm618, %v125, %v195
  %vm620 = vcmask 1043456
  %v621 = vsel %vm620, %v619, %v266
  %vm622 = vcmask 1045504
  %v623 = vsel %vm622, %v621, %v337
  %v624 = vsel %vm618, %v405, %v475
  %v625 = vsel %vm620, %v624, %v546
  %v626 = vsel %vm622, %v625, %v617
  %v627 = vperm.slane %v27, 0
  %630 = vrot.lane.b32.xlu0 %v623, 32
  %v631 = vpop.permute.xlu0 %630
  %632 = vrot.lane.b32.xlu0 %v626, 32
  %v633 = vpop.permute.xlu0 %632
  %v634 = vsel %vm34, %v631, 0
  %v636 = vsel %vm34, %v633, 0
  %638 = vmatpush.msra.mxu0 0.0
  %639 = vmatpush.msra.mxu0 0.0
  %640 = vmatpush.msra.mxu0 0.0
  %641 = vmatpush.msra.mxu0 0.0
  %642 = vmatpush.msra.mxu0 0.0
  %643 = vmatpush.msra.mxu0 0.0
  %644 = vmatpush.msra.mxu0 0.0
  %645 = vmatpush.msra.mxu0 0.0
  %646 = vmatpush.msra.mxu0 0.0
  %647 = vmatpush.msra.mxu0 0.0
  %648 = vmatpush.msra.mxu0 0.0
  %649 = vmatpush.msra.mxu0 0.0
  %650 = vmatpush.msra.mxu0 %v26
  %651 = vmatpush.msra.mxu0 %v25
  %652 = vmatpush.msra.mxu0 %v24
  %653 = vmatpush.msra.mxu0 %v23
  %654 = vmatmul.f32.gmra.mxu0 %v634
  %v655 = vpop.f32.mrf.mxu0
  %v656 = vadd.f32 %v627, %v655
  %657 = vmatmul.f32.gmra.mxu0 %v636
  %v658 = vpop.f32.mrf.mxu0
  %v659 = vadd.f32 %v627, %v658
  %660 = vdwg.mxu0
  %v661 = vld [vmem:[%s1] sm:$0x3]
  %v662 = vlaneseq
  %v663 = vand.u32 %v662, 127
  %vm664 = vcmp.eq.s32.totalorder %v663, 8
  %v665 = vsel %vm664, 0.0, -10000.0
  %v667 = vrot.slane %v665, 1
  %v668 = vperm.slane %v665, 0
  %v669 = vperm.slane %v667, 0
  %v672 = vadd.f32 %v668, %v28
  %v673 = vadd.f32 %v668, %v29
  %v674 = vadd.f32 %v669, %v28
  %v675 = vadd.f32 %v669, %v29
  %vm676 = vcmask 80896
  %v677 = vsel %vm676, %v672, -inf
  %678 = vmax.xlane.f32.xlu0 %v677
  %v679 = vpop.xlane.xlu0 %678
  %vm680 = vcmask 74752
  %v681 = vsel %vm680, %v673, -inf
  %682 = vmax.xlane.f32.xlu0 %v681
  %v683 = vpop.xlane.xlu0 %682
  %v684 = vsel %vm676, %v674, -inf
  %685 = vmax.xlane.f32.xlu0 %v684
  %v686 = vpop.xlane.xlu0 %685
  %v687 = vsel %vm680, %v675, -inf
  %688 = vmax.xlane.f32.xlu0 %v687
  %v689 = vpop.xlane.xlu0 %688
  %vm690 = vcmp.gt.s32.totalorder %v661, 0
  %v691 = vsel %vm690, 1, 0
  %v692 = vcvt.s32.f32 %v691
  %vm693 = vcmp.eq.s32.totalorder %v661, 1
  %v694 = vsel %vm693, 1, 0
  %v695 = vcvt.s32.f32 %v694
  %v697 = vperm.slane %v656, 0
  %v698 = vlaneseq
  %v699 = vshrl.u32 %v698, 7
  %701 = vset.pattern.permute.xlu0 %v699
  %702 = vperm.xlu0 %701, %v697
  %v703 = vpop.permute.xlu0 %702
  %v704 = vlaneseq
  %v705 = vshrl.u32 %v704, 7
  %v706 = vadd.s32 %v705, 8
  %707 = vset.pattern.permute.xlu0 %v706
  %708 = vperm.xlu0 %707, %v697
  %v709 = vpop.permute.xlu0 %708
  %v710 = vperm.slane %v656, 1
  %v711 = vlaneseq
  %v712 = vshrl.u32 %v711, 7
  %714 = vset.pattern.permute.xlu0 %v712
  %715 = vperm.xlu0 %714, %v710
  %v716 = vpop.permute.xlu0 %715
  %v717 = vlaneseq
  %v718 = vshrl.u32 %v717, 7
  %v719 = vadd.s32 %v718, 8
  %720 = vset.pattern.permute.xlu0 %v719
  %721 = vperm.xlu0 %720, %v710
  %v722 = vpop.permute.xlu0 %721
  %v727 = vadd.f32 %v679, %v703
  %v728 = vadd.f32 %v683, %v709
  %v729 = vadd.f32 %v686, %v716
  %v730 = vadd.f32 %v689, %v722
  %732 = vset.pattern.permute.xlu0 0
  %733 = vperm.xlu0 %732, %v692
  %v734 = vpop.permute.xlu0 %733
  %740 = vset.pattern.permute.xlu0 0
  %741 = vperm.xlu0 %740, %v727
  %v742 = vpop.permute.xlu0 %741
  %743 = vset.pattern.permute.xlu0 0
  %744 = vperm.xlu0 %743, %v728
  %v745 = vpop.permute.xlu0 %744
  %746 = vset.pattern.permute.xlu0 0
  %747 = vperm.xlu0 %746, %v729
  %v748 = vpop.permute.xlu0 %747
  %749 = vset.pattern.permute.xlu0 0
  %750 = vperm.xlu0 %749, %v730
  %v751 = vpop.permute.xlu0 %750
  %v752 = vperm.slane %v742, %v663
  %v753 = vadd.s32 %v663, 4294967288
  %v754 = vperm.slane %v745, %v753
  %vm755 = vcmask 130112
  %v756 = vsel %vm755, %v754, %v752
  %v757 = vperm.slane %v748, %v663
  %v758 = vperm.slane %v751, %v753
  %v759 = vsel %vm755, %v758, %v757
  %vm760 = vcmask 1041409
  %v761 = vsel %vm760, %v759, %v756
  %v763 = vmul.f32 %v734, %v761
  %v764 = vsub.f32 1.0, %v692
  %766 = vset.pattern.permute.xlu0 0
  %767 = vperm.xlu0 %766, %v764
  %v768 = vpop.permute.xlu0 %767
  %v770 = vmul.f32 %v768, %v665
  %v771 = vadd.f32 %v763, %v770
  %773 = vset.pattern.permute.xlu0 0
  %774 = vperm.xlu0 %773, %v695
  %v775 = vpop.permute.xlu0 %774
  %v777 = vperm.slane %v30, 0
  %v778 = vmul.f32 %v775, %v777
  %v779 = vadd.f32 %v771, %v778
  %v781 = vrot.slane %v779, 1
  %v782 = vperm.slane %v779, 0
  %v783 = vperm.slane %v781, 0
  %v786 = vadd.f32 %v782, %v28
  %v787 = vadd.f32 %v782, %v29
  %v788 = vadd.f32 %v783, %v28
  %v789 = vadd.f32 %v783, %v29
  %v790 = vsel %vm676, %v786, -inf
  %791 = vmax.xlane.f32.xlu0 %v790
  %v792 = vpop.xlane.xlu0 %791
  %v793 = vsel %vm680, %v787, -inf
  %794 = vmax.xlane.f32.xlu0 %v793
  %v795 = vpop.xlane.xlu0 %794
  %v796 = vsel %vm676, %v788, -inf
  %797 = vmax.xlane.f32.xlu0 %v796
  %v798 = vpop.xlane.xlu0 %797
  %v799 = vsel %vm680, %v789, -inf
  %800 = vmax.xlane.f32.xlu0 %v799
  %v801 = vpop.xlane.xlu0 %800
  %vm802 = vcmp.eq.f32.partialorder %v786, %v792
  %vm803 = vcmp.eq.f32.partialorder %v787, %v795
  %vm804 = vcmp.eq.f32.partialorder %v788, %v798
  %vm805 = vcmp.eq.f32.partialorder %v789, %v801
  %v806 = vsel %vm802, %v663, 10
  %v807 = vsel %vm803, %v663, 10
  %v808 = vsel %vm804, %v663, 10
  %v809 = vsel %vm805, %v663, 10
  %v810 = vsel %vm676, %v806, 2147483647
  %v811 = vand.u32 %v810, 65535
  %v812 = vshra.s32 %v810, 16
  %v813 = vcvt.s32.f32 %v811
  %v814 = vcvt.s32.f32 %v812
  %815 = vmin.xlane.f32.xlu0 %v814
  %v816 = vpop.xlane.xlu0 %815
  %vm817 = vcmp.eq.f32.partialorder %v814, %v816
  %v818 = vsel %vm817, %v813, inf
  %819 = vmin.xlane.f32.xlu0 %v818
  %v820 = vpop.xlane.xlu0 %819
  %v821 = vcvt.f32.s32 %v820
  %v822 = vcvt.f32.s32 %v816
  %v823 = vshll.u32 %v822, 16
  %v824 = vadd.s32 %v823, %v821
  %v825 = vsel %vm680, %v807, 2147483647
  %v826 = vand.u32 %v825, 65535
  %v827 = vshra.s32 %v825, 16
  %v828 = vcvt.s32.f32 %v826
  %v829 = vcvt.s32.f32 %v827
  %830 = vmin.xlane.f32.xlu0 %v829
  %v831 = vpop.xlane.xlu0 %830
  %vm832 = vcmp.eq.f32.partialorder %v829, %v831
  %v833 = vsel %vm832, %v828, inf
  %834 = vmin.xlane.f32.xlu0 %v833
  %v835 = vpop.xlane.xlu0 %834
  %v836 = vcvt.f32.s32 %v835
  %v837 = vcvt.f32.s32 %v831
  %v838 = vshll.u32 %v837, 16
  %v839 = vadd.s32 %v838, %v836
  %v840 = vsel %vm676, %v808, 2147483647
  %v841 = vand.u32 %v840, 65535
  %v842 = vshra.s32 %v840, 16
  %v843 = vcvt.s32.f32 %v841
  %v844 = vcvt.s32.f32 %v842
  %845 = vmin.xlane.f32.xlu0 %v844
  %v846 = vpop.xlane.xlu0 %845
  %vm847 = vcmp.eq.f32.partialorder %v844, %v846
  %v848 = vsel %vm847, %v843, inf
  %849 = vmin.xlane.f32.xlu0 %v848
  %v850 = vpop.xlane.xlu0 %849
  %v851 = vcvt.f32.s32 %v850
  %v852 = vcvt.f32.s32 %v846
  %v853 = vshll.u32 %v852, 16
  %v854 = vadd.s32 %v853, %v851
  %v855 = vsel %vm680, %v809, 2147483647
  %v856 = vand.u32 %v855, 65535
  %v857 = vshra.s32 %v855, 16
  %v858 = vcvt.s32.f32 %v856
  %v859 = vcvt.s32.f32 %v857
  %860 = vmin.xlane.f32.xlu0 %v859
  %v861 = vpop.xlane.xlu0 %860
  %vm862 = vcmp.eq.f32.partialorder %v859, %v861
  %v863 = vsel %vm862, %v858, inf
  %864 = vmin.xlane.f32.xlu0 %v863
  %v865 = vpop.xlane.xlu0 %864
  %v866 = vcvt.f32.s32 %v865
  %v867 = vcvt.f32.s32 %v861
  %v868 = vshll.u32 %v867, 16
  %v869 = vadd.s32 %v868, %v866
  %vm870 = vcmp.gt.s32.totalorder %v661, 1
  %v871 = vsel %vm870, 1, 0
  %v872 = vcvt.s32.f32 %v871
  %vm873 = vcmp.eq.s32.totalorder %v661, 2
  %v874 = vsel %vm873, 1, 0
  %v875 = vcvt.s32.f32 %v874
  %v876 = vperm.slane %v656, 2
  %v877 = vlaneseq
  %v878 = vshrl.u32 %v877, 7
  %880 = vset.pattern.permute.xlu0 %v878
  %881 = vperm.xlu0 %880, %v876
  %v882 = vpop.permute.xlu0 %881
  %v883 = vlaneseq
  %v884 = vshrl.u32 %v883, 7
  %v885 = vadd.s32 %v884, 8
  %886 = vset.pattern.permute.xlu0 %v885
  %887 = vperm.xlu0 %886, %v876
  %v888 = vpop.permute.xlu0 %887
  %v889 = vperm.slane %v656, 3
  %v890 = vlaneseq
  %v891 = vshrl.u32 %v890, 7
  %893 = vset.pattern.permute.xlu0 %v891
  %894 = vperm.xlu0 %893, %v889
  %v895 = vpop.permute.xlu0 %894
  %v896 = vlaneseq
  %v897 = vshrl.u32 %v896, 7
  %v898 = vadd.s32 %v897, 8
  %899 = vset.pattern.permute.xlu0 %v898
  %900 = vperm.xlu0 %899, %v889
  %v901 = vpop.permute.xlu0 %900
  %v906 = vadd.f32 %v792, %v882
  %v907 = vadd.f32 %v795, %v888
  %v908 = vadd.f32 %v798, %v895
  %v909 = vadd.f32 %v801, %v901
  %911 = vset.pattern.permute.xlu0 0
  %912 = vperm.xlu0 %911, %v872
  %v913 = vpop.permute.xlu0 %912
  %919 = vset.pattern.permute.xlu0 0
  %920 = vperm.xlu0 %919, %v906
  %v921 = vpop.permute.xlu0 %920
  %922 = vset.pattern.permute.xlu0 0
  %923 = vperm.xlu0 %922, %v907
  %v924 = vpop.permute.xlu0 %923
  %925 = vset.pattern.permute.xlu0 0
  %926 = vperm.xlu0 %925, %v908
  %v927 = vpop.permute.xlu0 %926
  %928 = vset.pattern.permute.xlu0 0
  %929 = vperm.xlu0 %928, %v909
  %v930 = vpop.permute.xlu0 %929
  %v931 = vperm.slane %v921, %v663
  %v932 = vperm.slane %v924, %v753
  %v933 = vsel %vm755, %v932, %v931
  %v934 = vperm.slane %v927, %v663
  %v935 = vperm.slane %v930, %v753
  %v936 = vsel %vm755, %v935, %v934
  %v937 = vsel %vm760, %v936, %v933
  %v939 = vmul.f32 %v913, %v937
  %v940 = vsub.f32 1.0, %v872
  %942 = vset.pattern.permute.xlu0 0
  %943 = vperm.xlu0 %942, %v940
  %v944 = vpop.permute.xlu0 %943
  %v946 = vmul.f32 %v944, %v779
  %v947 = vadd.f32 %v939, %v946
  %949 = vset.pattern.permute.xlu0 0
  %950 = vperm.xlu0 %949, %v875
  %v951 = vpop.permute.xlu0 %950
  %v953 = vmul.f32 %v951, %v777
  %v954 = vadd.f32 %v947, %v953
  %v956 = vrot.slane %v954, 1
  %v957 = vperm.slane %v954, 0
  %v958 = vperm.slane %v956, 0
  %v961 = vadd.f32 %v957, %v28
  %v962 = vadd.f32 %v957, %v29
  %v963 = vadd.f32 %v958, %v28
  %v964 = vadd.f32 %v958, %v29
  %v965 = vsel %vm676, %v961, -inf
  %966 = vmax.xlane.f32.xlu0 %v965
  %v967 = vpop.xlane.xlu0 %966
  %v968 = vsel %vm680, %v962, -inf
  %969 = vmax.xlane.f32.xlu0 %v968
  %v970 = vpop.xlane.xlu0 %969
  %v971 = vsel %vm676, %v963, -inf
  %972 = vmax.xlane.f32.xlu0 %v971
  %v973 = vpop.xlane.xlu0 %972
  %v974 = vsel %vm680, %v964, -inf
  %975 = vmax.xlane.f32.xlu0 %v974
  %v976 = vpop.xlane.xlu0 %975
  %vm977 = vcmp.eq.f32.partialorder %v961, %v967
  %vm978 = vcmp.eq.f32.partialorder %v962, %v970
  %vm979 = vcmp.eq.f32.partialorder %v963, %v973
  %vm980 = vcmp.eq.f32.partialorder %v964, %v976
  %v981 = vsel %vm977, %v663, 10
  %v982 = vsel %vm978, %v663, 10
  %v983 = vsel %vm979, %v663, 10
  %v984 = vsel %vm980, %v663, 10
  %v985 = vsel %vm676, %v981, 2147483647
  %v986 = vand.u32 %v985, 65535
  %v987 = vshra.s32 %v985, 16
  %v988 = vcvt.s32.f32 %v986
  %v989 = vcvt.s32.f32 %v987
  %990 = vmin.xlane.f32.xlu0 %v989
  %v991 = vpop.xlane.xlu0 %990
  %vm992 = vcmp.eq.f32.partialorder %v989, %v991
  %v993 = vsel %vm992, %v988, inf
  %994 = vmin.xlane.f32.xlu0 %v993
  %v995 = vpop.xlane.xlu0 %994
  %v996 = vcvt.f32.s32 %v995
  %v997 = vcvt.f32.s32 %v991
  %v998 = vshll.u32 %v997, 16
  %v999 = vadd.s32 %v998, %v996
  %v1000 = vsel %vm680, %v982, 2147483647
  %v1001 = vand.u32 %v1000, 65535
  %v1002 = vshra.s32 %v1000, 16
  %v1003 = vcvt.s32.f32 %v1001
  %v1004 = vcvt.s32.f32 %v1002
  %1005 = vmin.xlane.f32.xlu0 %v1004
  %v1006 = vpop.xlane.xlu0 %1005
  %vm1007 = vcmp.eq.f32.partialorder %v1004, %v1006
  %v1008 = vsel %vm1007, %v1003, inf
  %1009 = vmin.xlane.f32.xlu0 %v1008
  %v1010 = vpop.xlane.xlu0 %1009
  %v1011 = vcvt.f32.s32 %v1010
  %v1012 = vcvt.f32.s32 %v1006
  %v1013 = vshll.u32 %v1012, 16
  %v1014 = vadd.s32 %v1013, %v1011
  %v1015 = vsel %vm676, %v983, 2147483647
  %v1016 = vand.u32 %v1015, 65535
  %v1017 = vshra.s32 %v1015, 16
  %v1018 = vcvt.s32.f32 %v1016
  %v1019 = vcvt.s32.f32 %v1017
  %1020 = vmin.xlane.f32.xlu0 %v1019
  %v1021 = vpop.xlane.xlu0 %1020
  %vm1022 = vcmp.eq.f32.partialorder %v1019, %v1021
  %v1023 = vsel %vm1022, %v1018, inf
  %1024 = vmin.xlane.f32.xlu0 %v1023
  %v1025 = vpop.xlane.xlu0 %1024
  %v1026 = vcvt.f32.s32 %v1025
  %v1027 = vcvt.f32.s32 %v1021
  %v1028 = vshll.u32 %v1027, 16
  %v1029 = vadd.s32 %v1028, %v1026
  %v1030 = vsel %vm680, %v984, 2147483647
  %v1031 = vand.u32 %v1030, 65535
  %v1032 = vshra.s32 %v1030, 16
  %v1033 = vcvt.s32.f32 %v1031
  %v1034 = vcvt.s32.f32 %v1032
  %1035 = vmin.xlane.f32.xlu0 %v1034
  %v1036 = vpop.xlane.xlu0 %1035
  %vm1037 = vcmp.eq.f32.partialorder %v1034, %v1036
  %v1038 = vsel %vm1037, %v1033, inf
  %1039 = vmin.xlane.f32.xlu0 %v1038
  %v1040 = vpop.xlane.xlu0 %1039
  %v1041 = vcvt.f32.s32 %v1040
  %v1042 = vcvt.f32.s32 %v1036
  %v1043 = vshll.u32 %v1042, 16
  %v1044 = vadd.s32 %v1043, %v1041
  %vm1045 = vcmp.gt.s32.totalorder %v661, 2
  %v1046 = vsel %vm1045, 1, 0
  %v1047 = vcvt.s32.f32 %v1046
  %vm1048 = vcmp.eq.s32.totalorder %v661, 3
  %v1049 = vsel %vm1048, 1, 0
  %v1050 = vcvt.s32.f32 %v1049
  %v1051 = vperm.slane %v656, 4
  %v1052 = vlaneseq
  %v1053 = vshrl.u32 %v1052, 7
  %1055 = vset.pattern.permute.xlu0 %v1053
  %1056 = vperm.xlu0 %1055, %v1051
  %v1057 = vpop.permute.xlu0 %1056
  %v1058 = vlaneseq
  %v1059 = vshrl.u32 %v1058, 7
  %v1060 = vadd.s32 %v1059, 8
  %1061 = vset.pattern.permute.xlu0 %v1060
  %1062 = vperm.xlu0 %1061, %v1051
  %v1063 = vpop.permute.xlu0 %1062
  %v1064 = vperm.slane %v656, 5
  %v1065 = vlaneseq
  %v1066 = vshrl.u32 %v1065, 7
  %1068 = vset.pattern.permute.xlu0 %v1066
  %1069 = vperm.xlu0 %1068, %v1064
  %v1070 = vpop.permute.xlu0 %1069
  %v1071 = vlaneseq
  %v1072 = vshrl.u32 %v1071, 7
  %v1073 = vadd.s32 %v1072, 8
  %1074 = vset.pattern.permute.xlu0 %v1073
  %1075 = vperm.xlu0 %1074, %v1064
  %v1076 = vpop.permute.xlu0 %1075
  %v1081 = vadd.f32 %v967, %v1057
  %v1082 = vadd.f32 %v970, %v1063
  %v1083 = vadd.f32 %v973, %v1070
  %v1084 = vadd.f32 %v976, %v1076
  %1086 = vset.pattern.permute.xlu0 0
  %1087 = vperm.xlu0 %1086, %v1047
  %v1088 = vpop.permute.xlu0 %1087
  %1094 = vset.pattern.permute.xlu0 0
  %1095 = vperm.xlu0 %1094, %v1081
  %v1096 = vpop.permute.xlu0 %1095
  %1097 = vset.pattern.permute.xlu0 0
  %1098 = vperm.xlu0 %1097, %v1082
  %v1099 = vpop.permute.xlu0 %1098
  %1100 = vset.pattern.permute.xlu0 0
  %1101 = vperm.xlu0 %1100, %v1083
  %v1102 = vpop.permute.xlu0 %1101
  %1103 = vset.pattern.permute.xlu0 0
  %1104 = vperm.xlu0 %1103, %v1084
  %v1105 = vpop.permute.xlu0 %1104
  %v1106 = vperm.slane %v1096, %v663
  %v1107 = vperm.slane %v1099, %v753
  %v1108 = vsel %vm755, %v1107, %v1106
  %v1109 = vperm.slane %v1102, %v663
  %v1110 = vperm.slane %v1105, %v753
  %v1111 = vsel %vm755, %v1110, %v1109
  %v1112 = vsel %vm760, %v1111, %v1108
  %v1114 = vmul.f32 %v1088, %v1112
  %v1115 = vsub.f32 1.0, %v1047
  %1117 = vset.pattern.permute.xlu0 0
  %1118 = vperm.xlu0 %1117, %v1115
  %v1119 = vpop.permute.xlu0 %1118
  %v1121 = vmul.f32 %v1119, %v954
  %v1122 = vadd.f32 %v1114, %v1121
  %1124 = vset.pattern.permute.xlu0 0
  %1125 = vperm.xlu0 %1124, %v1050
  %v1126 = vpop.permute.xlu0 %1125
  %v1128 = vmul.f32 %v1126, %v777
  %v1129 = vadd.f32 %v1122, %v1128
  %v1131 = vrot.slane %v1129, 1
  %v1132 = vperm.slane %v1129, 0
  %v1133 = vperm.slane %v1131, 0
  %v1136 = vadd.f32 %v1132, %v28
  %v1137 = vadd.f32 %v1132, %v29
  %v1138 = vadd.f32 %v1133, %v28
  %v1139 = vadd.f32 %v1133, %v29
  %v1140 = vsel %vm676, %v1136, -inf
  %1141 = vmax.xlane.f32.xlu0 %v1140
  %v1142 = vpop.xlane.xlu0 %1141
  %v1143 = vsel %vm680, %v1137, -inf
  %1144 = vmax.xlane.f32.xlu0 %v1143
  %v1145 = vpop.xlane.xlu0 %1144
  %v1146 = vsel %vm676, %v1138, -inf
  %1147 = vmax.xlane.f32.xlu0 %v1146
  %v1148 = vpop.xlane.xlu0 %1147
  %v1149 = vsel %vm680, %v1139, -inf
  %1150 = vmax.xlane.f32.xlu0 %v1149
  %v1151 = vpop.xlane.xlu0 %1150
  %vm1152 = vcmp.eq.f32.partialorder %v1136, %v1142
  %vm1153 = vcmp.eq.f32.partialorder %v1137, %v1145
  %vm1154 = vcmp.eq.f32.partialorder %v1138, %v1148
  %vm1155 = vcmp.eq.f32.partialorder %v1139, %v1151
  %v1156 = vsel %vm1152, %v663, 10
  %v1157 = vsel %vm1153, %v663, 10
  %v1158 = vsel %vm1154, %v663, 10
  %v1159 = vsel %vm1155, %v663, 10
  %v1160 = vsel %vm676, %v1156, 2147483647
  %v1161 = vand.u32 %v1160, 65535
  %v1162 = vshra.s32 %v1160, 16
  %v1163 = vcvt.s32.f32 %v1161
  %v1164 = vcvt.s32.f32 %v1162
  %1165 = vmin.xlane.f32.xlu0 %v1164
  %v1166 = vpop.xlane.xlu0 %1165
  %vm1167 = vcmp.eq.f32.partialorder %v1164, %v1166
  %v1168 = vsel %vm1167, %v1163, inf
  %1169 = vmin.xlane.f32.xlu0 %v1168
  %v1170 = vpop.xlane.xlu0 %1169
  %v1171 = vcvt.f32.s32 %v1170
  %v1172 = vcvt.f32.s32 %v1166
  %v1173 = vshll.u32 %v1172, 16
  %v1174 = vadd.s32 %v1173, %v1171
  %v1175 = vsel %vm680, %v1157, 2147483647
  %v1176 = vand.u32 %v1175, 65535
  %v1177 = vshra.s32 %v1175, 16
  %v1178 = vcvt.s32.f32 %v1176
  %v1179 = vcvt.s32.f32 %v1177
  %1180 = vmin.xlane.f32.xlu0 %v1179
  %v1181 = vpop.xlane.xlu0 %1180
  %vm1182 = vcmp.eq.f32.partialorder %v1179, %v1181
  %v1183 = vsel %vm1182, %v1178, inf
  %1184 = vmin.xlane.f32.xlu0 %v1183
  %v1185 = vpop.xlane.xlu0 %1184
  %v1186 = vcvt.f32.s32 %v1185
  %v1187 = vcvt.f32.s32 %v1181
  %v1188 = vshll.u32 %v1187, 16
  %v1189 = vadd.s32 %v1188, %v1186
  %v1190 = vsel %vm676, %v1158, 2147483647
  %v1191 = vand.u32 %v1190, 65535
  %v1192 = vshra.s32 %v1190, 16
  %v1193 = vcvt.s32.f32 %v1191
  %v1194 = vcvt.s32.f32 %v1192
  %1195 = vmin.xlane.f32.xlu0 %v1194
  %v1196 = vpop.xlane.xlu0 %1195
  %vm1197 = vcmp.eq.f32.partialorder %v1194, %v1196
  %v1198 = vsel %vm1197, %v1193, inf
  %1199 = vmin.xlane.f32.xlu0 %v1198
  %v1200 = vpop.xlane.xlu0 %1199
  %v1201 = vcvt.f32.s32 %v1200
  %v1202 = vcvt.f32.s32 %v1196
  %v1203 = vshll.u32 %v1202, 16
  %v1204 = vadd.s32 %v1203, %v1201
  %v1205 = vsel %vm680, %v1159, 2147483647
  %v1206 = vand.u32 %v1205, 65535
  %v1207 = vshra.s32 %v1205, 16
  %v1208 = vcvt.s32.f32 %v1206
  %v1209 = vcvt.s32.f32 %v1207
  %1210 = vmin.xlane.f32.xlu0 %v1209
  %v1211 = vpop.xlane.xlu0 %1210
  %vm1212 = vcmp.eq.f32.partialorder %v1209, %v1211
  %v1213 = vsel %vm1212, %v1208, inf
  %1214 = vmin.xlane.f32.xlu0 %v1213
  %v1215 = vpop.xlane.xlu0 %1214
  %v1216 = vcvt.f32.s32 %v1215
  %v1217 = vcvt.f32.s32 %v1211
  %v1218 = vshll.u32 %v1217, 16
  %v1219 = vadd.s32 %v1218, %v1216
  %vm1220 = vcmp.gt.s32.totalorder %v661, 3
  %v1221 = vsel %vm1220, 1, 0
  %v1222 = vcvt.s32.f32 %v1221
  %vm1223 = vcmp.eq.s32.totalorder %v661, 4
  %v1224 = vsel %vm1223, 1, 0
  %v1225 = vcvt.s32.f32 %v1224
  %v1226 = vperm.slane %v656, 6
  %v1227 = vlaneseq
  %v1228 = vshrl.u32 %v1227, 7
  %1230 = vset.pattern.permute.xlu0 %v1228
  %1231 = vperm.xlu0 %1230, %v1226
  %v1232 = vpop.permute.xlu0 %1231
  %v1233 = vlaneseq
  %v1234 = vshrl.u32 %v1233, 7
  %v1235 = vadd.s32 %v1234, 8
  %1236 = vset.pattern.permute.xlu0 %v1235
  %1237 = vperm.xlu0 %1236, %v1226
  %v1238 = vpop.permute.xlu0 %1237
  %v1239 = vperm.slane %v656, 7
  %v1240 = vlaneseq
  %v1241 = vshrl.u32 %v1240, 7
  %1243 = vset.pattern.permute.xlu0 %v1241
  %1244 = vperm.xlu0 %1243, %v1239
  %v1245 = vpop.permute.xlu0 %1244
  %v1246 = vlaneseq
  %v1247 = vshrl.u32 %v1246, 7
  %v1248 = vadd.s32 %v1247, 8
  %1249 = vset.pattern.permute.xlu0 %v1248
  %1250 = vperm.xlu0 %1249, %v1239
  %v1251 = vpop.permute.xlu0 %1250
  %v1256 = vadd.f32 %v1142, %v1232
  %v1257 = vadd.f32 %v1145, %v1238
  %v1258 = vadd.f32 %v1148, %v1245
  %v1259 = vadd.f32 %v1151, %v1251
  %1261 = vset.pattern.permute.xlu0 0
  %1262 = vperm.xlu0 %1261, %v1222
  %v1263 = vpop.permute.xlu0 %1262
  %1269 = vset.pattern.permute.xlu0 0
  %1270 = vperm.xlu0 %1269, %v1256
  %v1271 = vpop.permute.xlu0 %1270
  %1272 = vset.pattern.permute.xlu0 0
  %1273 = vperm.xlu0 %1272, %v1257
  %v1274 = vpop.permute.xlu0 %1273
  %1275 = vset.pattern.permute.xlu0 0
  %1276 = vperm.xlu0 %1275, %v1258
  %v1277 = vpop.permute.xlu0 %1276
  %1278 = vset.pattern.permute.xlu0 0
  %1279 = vperm.xlu0 %1278, %v1259
  %v1280 = vpop.permute.xlu0 %1279
  %v1281 = vperm.slane %v1271, %v663
  %v1282 = vperm.slane %v1274, %v753
  %v1283 = vsel %vm755, %v1282, %v1281
  %v1284 = vperm.slane %v1277, %v663
  %v1285 = vperm.slane %v1280, %v753
  %v1286 = vsel %vm755, %v1285, %v1284
  %v1287 = vsel %vm760, %v1286, %v1283
  %v1289 = vmul.f32 %v1263, %v1287
  %v1290 = vsub.f32 1.0, %v1222
  %1292 = vset.pattern.permute.xlu0 0
  %1293 = vperm.xlu0 %1292, %v1290
  %v1294 = vpop.permute.xlu0 %1293
  %v1296 = vmul.f32 %v1294, %v1129
  %v1297 = vadd.f32 %v1289, %v1296
  %1299 = vset.pattern.permute.xlu0 0
  %1300 = vperm.xlu0 %1299, %v1225
  %v1301 = vpop.permute.xlu0 %1300
  %v1303 = vmul.f32 %v1301, %v777
  %v1304 = vadd.f32 %v1297, %v1303
  %v1306 = vrot.slane %v1304, 1
  %v1307 = vperm.slane %v1304, 0
  %v1308 = vperm.slane %v1306, 0
  %v1311 = vadd.f32 %v1307, %v28
  %v1312 = vadd.f32 %v1307, %v29
  %v1313 = vadd.f32 %v1308, %v28
  %v1314 = vadd.f32 %v1308, %v29
  %v1315 = vsel %vm676, %v1311, -inf
  %1316 = vmax.xlane.f32.xlu0 %v1315
  %v1317 = vpop.xlane.xlu0 %1316
  %v1318 = vsel %vm680, %v1312, -inf
  %1319 = vmax.xlane.f32.xlu0 %v1318
  %v1320 = vpop.xlane.xlu0 %1319
  %v1321 = vsel %vm676, %v1313, -inf
  %1322 = vmax.xlane.f32.xlu0 %v1321
  %v1323 = vpop.xlane.xlu0 %1322
  %v1324 = vsel %vm680, %v1314, -inf
  %1325 = vmax.xlane.f32.xlu0 %v1324
  %v1326 = vpop.xlane.xlu0 %1325
  %vm1327 = vcmp.eq.f32.partialorder %v1311, %v1317
  %vm1328 = vcmp.eq.f32.partialorder %v1312, %v1320
  %vm1329 = vcmp.eq.f32.partialorder %v1313, %v1323
  %vm1330 = vcmp.eq.f32.partialorder %v1314, %v1326
  %v1331 = vsel %vm1327, %v663, 10
  %v1332 = vsel %vm1328, %v663, 10
  %v1333 = vsel %vm1329, %v663, 10
  %v1334 = vsel %vm1330, %v663, 10
  %v1335 = vsel %vm676, %v1331, 2147483647
  %v1336 = vand.u32 %v1335, 65535
  %v1337 = vshra.s32 %v1335, 16
  %v1338 = vcvt.s32.f32 %v1336
  %v1339 = vcvt.s32.f32 %v1337
  %1340 = vmin.xlane.f32.xlu0 %v1339
  %v1341 = vpop.xlane.xlu0 %1340
  %vm1342 = vcmp.eq.f32.partialorder %v1339, %v1341
  %v1343 = vsel %vm1342, %v1338, inf
  %1344 = vmin.xlane.f32.xlu0 %v1343
  %v1345 = vpop.xlane.xlu0 %1344
  %v1346 = vcvt.f32.s32 %v1345
  %v1347 = vcvt.f32.s32 %v1341
  %v1348 = vshll.u32 %v1347, 16
  %v1349 = vadd.s32 %v1348, %v1346
  %v1350 = vsel %vm680, %v1332, 2147483647
  %v1351 = vand.u32 %v1350, 65535
  %v1352 = vshra.s32 %v1350, 16
  %v1353 = vcvt.s32.f32 %v1351
  %v1354 = vcvt.s32.f32 %v1352
  %1355 = vmin.xlane.f32.xlu0 %v1354
  %v1356 = vpop.xlane.xlu0 %1355
  %vm1357 = vcmp.eq.f32.partialorder %v1354, %v1356
  %v1358 = vsel %vm1357, %v1353, inf
  %1359 = vmin.xlane.f32.xlu0 %v1358
  %v1360 = vpop.xlane.xlu0 %1359
  %v1361 = vcvt.f32.s32 %v1360
  %v1362 = vcvt.f32.s32 %v1356
  %v1363 = vshll.u32 %v1362, 16
  %v1364 = vadd.s32 %v1363, %v1361
  %v1365 = vsel %vm676, %v1333, 2147483647
  %v1366 = vand.u32 %v1365, 65535
  %v1367 = vshra.s32 %v1365, 16
  %v1368 = vcvt.s32.f32 %v1366
  %v1369 = vcvt.s32.f32 %v1367
  %1370 = vmin.xlane.f32.xlu0 %v1369
  %v1371 = vpop.xlane.xlu0 %1370
  %vm1372 = vcmp.eq.f32.partialorder %v1369, %v1371
  %v1373 = vsel %vm1372, %v1368, inf
  %1374 = vmin.xlane.f32.xlu0 %v1373
  %v1375 = vpop.xlane.xlu0 %1374
  %v1376 = vcvt.f32.s32 %v1375
  %v1377 = vcvt.f32.s32 %v1371
  %v1378 = vshll.u32 %v1377, 16
  %v1379 = vadd.s32 %v1378, %v1376
  %v1380 = vsel %vm680, %v1334, 2147483647
  %v1381 = vand.u32 %v1380, 65535
  %v1382 = vshra.s32 %v1380, 16
  %v1383 = vcvt.s32.f32 %v1381
  %v1384 = vcvt.s32.f32 %v1382
  %1385 = vmin.xlane.f32.xlu0 %v1384
  %v1386 = vpop.xlane.xlu0 %1385
  %vm1387 = vcmp.eq.f32.partialorder %v1384, %v1386
  %v1388 = vsel %vm1387, %v1383, inf
  %1389 = vmin.xlane.f32.xlu0 %v1388
  %v1390 = vpop.xlane.xlu0 %1389
  %v1391 = vcvt.f32.s32 %v1390
  %v1392 = vcvt.f32.s32 %v1386
  %v1393 = vshll.u32 %v1392, 16
  %v1394 = vadd.s32 %v1393, %v1391
  %vm1395 = vcmp.gt.s32.totalorder %v661, 4
  %v1396 = vsel %vm1395, 1, 0
  %v1397 = vcvt.s32.f32 %v1396
  %vm1398 = vcmp.eq.s32.totalorder %v661, 5
  %v1399 = vsel %vm1398, 1, 0
  %v1400 = vcvt.s32.f32 %v1399
  %v1402 = vperm.slane %v659, 0
  %v1403 = vlaneseq
  %v1404 = vshrl.u32 %v1403, 7
  %1406 = vset.pattern.permute.xlu0 %v1404
  %1407 = vperm.xlu0 %1406, %v1402
  %v1408 = vpop.permute.xlu0 %1407
  %v1409 = vlaneseq
  %v1410 = vshrl.u32 %v1409, 7
  %v1411 = vadd.s32 %v1410, 8
  %1412 = vset.pattern.permute.xlu0 %v1411
  %1413 = vperm.xlu0 %1412, %v1402
  %v1414 = vpop.permute.xlu0 %1413
  %v1415 = vperm.slane %v659, 1
  %v1416 = vlaneseq
  %v1417 = vshrl.u32 %v1416, 7
  %1419 = vset.pattern.permute.xlu0 %v1417
  %1420 = vperm.xlu0 %1419, %v1415
  %v1421 = vpop.permute.xlu0 %1420
  %v1422 = vlaneseq
  %v1423 = vshrl.u32 %v1422, 7
  %v1424 = vadd.s32 %v1423, 8
  %1425 = vset.pattern.permute.xlu0 %v1424
  %1426 = vperm.xlu0 %1425, %v1415
  %v1427 = vpop.permute.xlu0 %1426
  %v1432 = vadd.f32 %v1317, %v1408
  %v1433 = vadd.f32 %v1320, %v1414
  %v1434 = vadd.f32 %v1323, %v1421
  %v1435 = vadd.f32 %v1326, %v1427
  %1437 = vset.pattern.permute.xlu0 0
  %1438 = vperm.xlu0 %1437, %v1397
  %v1439 = vpop.permute.xlu0 %1438
  %1445 = vset.pattern.permute.xlu0 0
  %1446 = vperm.xlu0 %1445, %v1432
  %v1447 = vpop.permute.xlu0 %1446
  %1448 = vset.pattern.permute.xlu0 0
  %1449 = vperm.xlu0 %1448, %v1433
  %v1450 = vpop.permute.xlu0 %1449
  %1451 = vset.pattern.permute.xlu0 0
  %1452 = vperm.xlu0 %1451, %v1434
  %v1453 = vpop.permute.xlu0 %1452
  %1454 = vset.pattern.permute.xlu0 0
  %1455 = vperm.xlu0 %1454, %v1435
  %v1456 = vpop.permute.xlu0 %1455
  %v1457 = vperm.slane %v1447, %v663
  %v1458 = vperm.slane %v1450, %v753
  %v1459 = vsel %vm755, %v1458, %v1457
  %v1460 = vperm.slane %v1453, %v663
  %v1461 = vperm.slane %v1456, %v753
  %v1462 = vsel %vm755, %v1461, %v1460
  %v1463 = vsel %vm760, %v1462, %v1459
  %v1465 = vmul.f32 %v1439, %v1463
  %v1466 = vsub.f32 1.0, %v1397
  %1468 = vset.pattern.permute.xlu0 0
  %1469 = vperm.xlu0 %1468, %v1466
  %v1470 = vpop.permute.xlu0 %1469
  %v1472 = vmul.f32 %v1470, %v1304
  %v1473 = vadd.f32 %v1465, %v1472
  %1475 = vset.pattern.permute.xlu0 0
  %1476 = vperm.xlu0 %1475, %v1400
  %v1477 = vpop.permute.xlu0 %1476
  %v1479 = vmul.f32 %v1477, %v777
  %v1480 = vadd.f32 %v1473, %v1479
  %v1482 = vrot.slane %v1480, 1
  %v1483 = vperm.slane %v1480, 0
  %v1484 = vperm.slane %v1482, 0
  %v1487 = vadd.f32 %v1483, %v28
  %v1488 = vadd.f32 %v1483, %v29
  %v1489 = vadd.f32 %v1484, %v28
  %v1490 = vadd.f32 %v1484, %v29
  %v1491 = vsel %vm676, %v1487, -inf
  %1492 = vmax.xlane.f32.xlu0 %v1491
  %v1493 = vpop.xlane.xlu0 %1492
  %v1494 = vsel %vm680, %v1488, -inf
  %1495 = vmax.xlane.f32.xlu0 %v1494
  %v1496 = vpop.xlane.xlu0 %1495
  %v1497 = vsel %vm676, %v1489, -inf
  %1498 = vmax.xlane.f32.xlu0 %v1497
  %v1499 = vpop.xlane.xlu0 %1498
  %v1500 = vsel %vm680, %v1490, -inf
  %1501 = vmax.xlane.f32.xlu0 %v1500
  %v1502 = vpop.xlane.xlu0 %1501
  %vm1503 = vcmp.eq.f32.partialorder %v1487, %v1493
  %vm1504 = vcmp.eq.f32.partialorder %v1488, %v1496
  %vm1505 = vcmp.eq.f32.partialorder %v1489, %v1499
  %vm1506 = vcmp.eq.f32.partialorder %v1490, %v1502
  %v1507 = vsel %vm1503, %v663, 10
  %v1508 = vsel %vm1504, %v663, 10
  %v1509 = vsel %vm1505, %v663, 10
  %v1510 = vsel %vm1506, %v663, 10
  %v1511 = vsel %vm676, %v1507, 2147483647
  %v1512 = vand.u32 %v1511, 65535
  %v1513 = vshra.s32 %v1511, 16
  %v1514 = vcvt.s32.f32 %v1512
  %v1515 = vcvt.s32.f32 %v1513
  %1516 = vmin.xlane.f32.xlu0 %v1515
  %v1517 = vpop.xlane.xlu0 %1516
  %vm1518 = vcmp.eq.f32.partialorder %v1515, %v1517
  %v1519 = vsel %vm1518, %v1514, inf
  %1520 = vmin.xlane.f32.xlu0 %v1519
  %v1521 = vpop.xlane.xlu0 %1520
  %v1522 = vcvt.f32.s32 %v1521
  %v1523 = vcvt.f32.s32 %v1517
  %v1524 = vshll.u32 %v1523, 16
  %v1525 = vadd.s32 %v1524, %v1522
  %v1526 = vsel %vm680, %v1508, 2147483647
  %v1527 = vand.u32 %v1526, 65535
  %v1528 = vshra.s32 %v1526, 16
  %v1529 = vcvt.s32.f32 %v1527
  %v1530 = vcvt.s32.f32 %v1528
  %1531 = vmin.xlane.f32.xlu0 %v1530
  %v1532 = vpop.xlane.xlu0 %1531
  %vm1533 = vcmp.eq.f32.partialorder %v1530, %v1532
  %v1534 = vsel %vm1533, %v1529, inf
  %1535 = vmin.xlane.f32.xlu0 %v1534
  %v1536 = vpop.xlane.xlu0 %1535
  %v1537 = vcvt.f32.s32 %v1536
  %v1538 = vcvt.f32.s32 %v1532
  %v1539 = vshll.u32 %v1538, 16
  %v1540 = vadd.s32 %v1539, %v1537
  %v1541 = vsel %vm676, %v1509, 2147483647
  %v1542 = vand.u32 %v1541, 65535
  %v1543 = vshra.s32 %v1541, 16
  %v1544 = vcvt.s32.f32 %v1542
  %v1545 = vcvt.s32.f32 %v1543
  %1546 = vmin.xlane.f32.xlu0 %v1545
  %v1547 = vpop.xlane.xlu0 %1546
  %vm1548 = vcmp.eq.f32.partialorder %v1545, %v1547
  %v1549 = vsel %vm1548, %v1544, inf
  %1550 = vmin.xlane.f32.xlu0 %v1549
  %v1551 = vpop.xlane.xlu0 %1550
  %v1552 = vcvt.f32.s32 %v1551
  %v1553 = vcvt.f32.s32 %v1547
  %v1554 = vshll.u32 %v1553, 16
  %v1555 = vadd.s32 %v1554, %v1552
  %v1556 = vsel %vm680, %v1510, 2147483647
  %v1557 = vand.u32 %v1556, 65535
  %v1558 = vshra.s32 %v1556, 16
  %v1559 = vcvt.s32.f32 %v1557
  %v1560 = vcvt.s32.f32 %v1558
  %1561 = vmin.xlane.f32.xlu0 %v1560
  %v1562 = vpop.xlane.xlu0 %1561
  %vm1563 = vcmp.eq.f32.partialorder %v1560, %v1562
  %v1564 = vsel %vm1563, %v1559, inf
  %1565 = vmin.xlane.f32.xlu0 %v1564
  %v1566 = vpop.xlane.xlu0 %1565
  %v1567 = vcvt.f32.s32 %v1566
  %v1568 = vcvt.f32.s32 %v1562
  %v1569 = vshll.u32 %v1568, 16
  %v1570 = vadd.s32 %v1569, %v1567
  %vm1571 = vcmp.gt.s32.totalorder %v661, 5
  %v1572 = vsel %vm1571, 1, 0
  %v1573 = vcvt.s32.f32 %v1572
  %vm1574 = vcmp.eq.s32.totalorder %v661, 6
  %v1575 = vsel %vm1574, 1, 0
  %v1576 = vcvt.s32.f32 %v1575
  %v1577 = vperm.slane %v659, 2
  %v1578 = vlaneseq
  %v1579 = vshrl.u32 %v1578, 7
  %1581 = vset.pattern.permute.xlu0 %v1579
  %1582 = vperm.xlu0 %1581, %v1577
  %v1583 = vpop.permute.xlu0 %1582
  %v1584 = vlaneseq
  %v1585 = vshrl.u32 %v1584, 7
  %v1586 = vadd.s32 %v1585, 8
  %1587 = vset.pattern.permute.xlu0 %v1586
  %1588 = vperm.xlu0 %1587, %v1577
  %v1589 = vpop.permute.xlu0 %1588
  %v1590 = vperm.slane %v659, 3
  %v1591 = vlaneseq
  %v1592 = vshrl.u32 %v1591, 7
  %1594 = vset.pattern.permute.xlu0 %v1592
  %1595 = vperm.xlu0 %1594, %v1590
  %v1596 = vpop.permute.xlu0 %1595
  %v1597 = vlaneseq
  %v1598 = vshrl.u32 %v1597, 7
  %v1599 = vadd.s32 %v1598, 8
  %1600 = vset.pattern.permute.xlu0 %v1599
  %1601 = vperm.xlu0 %1600, %v1590
  %v1602 = vpop.permute.xlu0 %1601
  %v1607 = vadd.f32 %v1493, %v1583
  %v1608 = vadd.f32 %v1496, %v1589
  %v1609 = vadd.f32 %v1499, %v1596
  %v1610 = vadd.f32 %v1502, %v1602
  %1612 = vset.pattern.permute.xlu0 0
  %1613 = vperm.xlu0 %1612, %v1573
  %v1614 = vpop.permute.xlu0 %1613
  %1620 = vset.pattern.permute.xlu0 0
  %1621 = vperm.xlu0 %1620, %v1607
  %v1622 = vpop.permute.xlu0 %1621
  %1623 = vset.pattern.permute.xlu0 0
  %1624 = vperm.xlu0 %1623, %v1608
  %v1625 = vpop.permute.xlu0 %1624
  %1626 = vset.pattern.permute.xlu0 0
  %1627 = vperm.xlu0 %1626, %v1609
  %v1628 = vpop.permute.xlu0 %1627
  %1629 = vset.pattern.permute.xlu0 0
  %1630 = vperm.xlu0 %1629, %v1610
  %v1631 = vpop.permute.xlu0 %1630
  %v1632 = vperm.slane %v1622, %v663
  %v1633 = vperm.slane %v1625, %v753
  %v1634 = vsel %vm755, %v1633, %v1632
  %v1635 = vperm.slane %v1628, %v663
  %v1636 = vperm.slane %v1631, %v753
  %v1637 = vsel %vm755, %v1636, %v1635
  %v1638 = vsel %vm760, %v1637, %v1634
  %v1640 = vmul.f32 %v1614, %v1638
  %v1641 = vsub.f32 1.0, %v1573
  %1643 = vset.pattern.permute.xlu0 0
  %1644 = vperm.xlu0 %1643, %v1641
  %v1645 = vpop.permute.xlu0 %1644
  %v1647 = vmul.f32 %v1645, %v1480
  %v1648 = vadd.f32 %v1640, %v1647
  %1650 = vset.pattern.permute.xlu0 0
  %1651 = vperm.xlu0 %1650, %v1576
  %v1652 = vpop.permute.xlu0 %1651
  %v1654 = vmul.f32 %v1652, %v777
  %v1655 = vadd.f32 %v1648, %v1654
  %v1657 = vrot.slane %v1655, 1
  %v1658 = vperm.slane %v1655, 0
  %v1659 = vperm.slane %v1657, 0
  %v1662 = vadd.f32 %v1658, %v28
  %v1663 = vadd.f32 %v1658, %v29
  %v1664 = vadd.f32 %v1659, %v28
  %v1665 = vadd.f32 %v1659, %v29
  %v1666 = vsel %vm676, %v1662, -inf
  %1667 = vmax.xlane.f32.xlu0 %v1666
  %v1668 = vpop.xlane.xlu0 %1667
  %v1669 = vsel %vm680, %v1663, -inf
  %1670 = vmax.xlane.f32.xlu0 %v1669
  %v1671 = vpop.xlane.xlu0 %1670
  %v1672 = vsel %vm676, %v1664, -inf
  %1673 = vmax.xlane.f32.xlu0 %v1672
  %v1674 = vpop.xlane.xlu0 %1673
  %v1675 = vsel %vm680, %v1665, -inf
  %1676 = vmax.xlane.f32.xlu0 %v1675
  %v1677 = vpop.xlane.xlu0 %1676
  %vm1678 = vcmp.eq.f32.partialorder %v1662, %v1668
  %vm1679 = vcmp.eq.f32.partialorder %v1663, %v1671
  %vm1680 = vcmp.eq.f32.partialorder %v1664, %v1674
  %vm1681 = vcmp.eq.f32.partialorder %v1665, %v1677
  %v1682 = vsel %vm1678, %v663, 10
  %v1683 = vsel %vm1679, %v663, 10
  %v1684 = vsel %vm1680, %v663, 10
  %v1685 = vsel %vm1681, %v663, 10
  %v1686 = vsel %vm676, %v1682, 2147483647
  %v1687 = vand.u32 %v1686, 65535
  %v1688 = vshra.s32 %v1686, 16
  %v1689 = vcvt.s32.f32 %v1687
  %v1690 = vcvt.s32.f32 %v1688
  %1691 = vmin.xlane.f32.xlu0 %v1690
  %v1692 = vpop.xlane.xlu0 %1691
  %vm1693 = vcmp.eq.f32.partialorder %v1690, %v1692
  %v1694 = vsel %vm1693, %v1689, inf
  %1695 = vmin.xlane.f32.xlu0 %v1694
  %v1696 = vpop.xlane.xlu0 %1695
  %v1697 = vcvt.f32.s32 %v1696
  %v1698 = vcvt.f32.s32 %v1692
  %v1699 = vshll.u32 %v1698, 16
  %v1700 = vadd.s32 %v1699, %v1697
  %v1701 = vsel %vm680, %v1683, 2147483647
  %v1702 = vand.u32 %v1701, 65535
  %v1703 = vshra.s32 %v1701, 16
  %v1704 = vcvt.s32.f32 %v1702
  %v1705 = vcvt.s32.f32 %v1703
  %1706 = vmin.xlane.f32.xlu0 %v1705
  %v1707 = vpop.xlane.xlu0 %1706
  %vm1708 = vcmp.eq.f32.partialorder %v1705, %v1707
  %v1709 = vsel %vm1708, %v1704, inf
  %1710 = vmin.xlane.f32.xlu0 %v1709
  %v1711 = vpop.xlane.xlu0 %1710
  %v1712 = vcvt.f32.s32 %v1711
  %v1713 = vcvt.f32.s32 %v1707
  %v1714 = vshll.u32 %v1713, 16
  %v1715 = vadd.s32 %v1714, %v1712
  %v1716 = vsel %vm676, %v1684, 2147483647
  %v1717 = vand.u32 %v1716, 65535
  %v1718 = vshra.s32 %v1716, 16
  %v1719 = vcvt.s32.f32 %v1717
  %v1720 = vcvt.s32.f32 %v1718
  %1721 = vmin.xlane.f32.xlu0 %v1720
  %v1722 = vpop.xlane.xlu0 %1721
  %vm1723 = vcmp.eq.f32.partialorder %v1720, %v1722
  %v1724 = vsel %vm1723, %v1719, inf
  %1725 = vmin.xlane.f32.xlu0 %v1724
  %v1726 = vpop.xlane.xlu0 %1725
  %v1727 = vcvt.f32.s32 %v1726
  %v1728 = vcvt.f32.s32 %v1722
  %v1729 = vshll.u32 %v1728, 16
  %v1730 = vadd.s32 %v1729, %v1727
  %v1731 = vsel %vm680, %v1685, 2147483647
  %v1732 = vand.u32 %v1731, 65535
  %v1733 = vshra.s32 %v1731, 16
  %v1734 = vcvt.s32.f32 %v1732
  %v1735 = vcvt.s32.f32 %v1733
  %1736 = vmin.xlane.f32.xlu0 %v1735
  %v1737 = vpop.xlane.xlu0 %1736
  %vm1738 = vcmp.eq.f32.partialorder %v1735, %v1737
  %v1739 = vsel %vm1738, %v1734, inf
  %1740 = vmin.xlane.f32.xlu0 %v1739
  %v1741 = vpop.xlane.xlu0 %1740
  %v1742 = vcvt.f32.s32 %v1741
  %v1743 = vcvt.f32.s32 %v1737
  %v1744 = vshll.u32 %v1743, 16
  %v1745 = vadd.s32 %v1744, %v1742
  %vm1746 = vcmp.gt.s32.totalorder %v661, 6
  %v1747 = vsel %vm1746, 1, 0
  %v1748 = vcvt.s32.f32 %v1747
  %vm1749 = vcmp.eq.s32.totalorder %v661, 7
  %v1750 = vsel %vm1749, 1, 0
  %v1751 = vcvt.s32.f32 %v1750
  %v1752 = vperm.slane %v659, 4
  %v1753 = vlaneseq
  %v1754 = vshrl.u32 %v1753, 7
  %1756 = vset.pattern.permute.xlu0 %v1754
  %1757 = vperm.xlu0 %1756, %v1752
  %v1758 = vpop.permute.xlu0 %1757
  %v1759 = vlaneseq
  %v1760 = vshrl.u32 %v1759, 7
  %v1761 = vadd.s32 %v1760, 8
  %1762 = vset.pattern.permute.xlu0 %v1761
  %1763 = vperm.xlu0 %1762, %v1752
  %v1764 = vpop.permute.xlu0 %1763
  %v1765 = vperm.slane %v659, 5
  %v1766 = vlaneseq
  %v1767 = vshrl.u32 %v1766, 7
  %1769 = vset.pattern.permute.xlu0 %v1767
  %1770 = vperm.xlu0 %1769, %v1765
  %v1771 = vpop.permute.xlu0 %1770
  %v1772 = vlaneseq
  %v1773 = vshrl.u32 %v1772, 7
  %v1774 = vadd.s32 %v1773, 8
  %1775 = vset.pattern.permute.xlu0 %v1774
  %1776 = vperm.xlu0 %1775, %v1765
  %v1777 = vpop.permute.xlu0 %1776
  %v1782 = vadd.f32 %v1668, %v1758
  %v1783 = vadd.f32 %v1671, %v1764
  %v1784 = vadd.f32 %v1674, %v1771
  %v1785 = vadd.f32 %v1677, %v1777
  %1787 = vset.pattern.permute.xlu0 0
  %1788 = vperm.xlu0 %1787, %v1748
  %v1789 = vpop.permute.xlu0 %1788
  %1795 = vset.pattern.permute.xlu0 0
  %1796 = vperm.xlu0 %1795, %v1782
  %v1797 = vpop.permute.xlu0 %1796
  %1798 = vset.pattern.permute.xlu0 0
  %1799 = vperm.xlu0 %1798, %v1783
  %v1800 = vpop.permute.xlu0 %1799
  %1801 = vset.pattern.permute.xlu0 0
  %1802 = vperm.xlu0 %1801, %v1784
  %v1803 = vpop.permute.xlu0 %1802
  %1804 = vset.pattern.permute.xlu0 0
  %1805 = vperm.xlu0 %1804, %v1785
  %v1806 = vpop.permute.xlu0 %1805
  %v1807 = vperm.slane %v1797, %v663
  %v1808 = vperm.slane %v1800, %v753
  %v1809 = vsel %vm755, %v1808, %v1807
  %v1810 = vperm.slane %v1803, %v663
  %v1811 = vperm.slane %v1806, %v753
  %v1812 = vsel %vm755, %v1811, %v1810
  %v1813 = vsel %vm760, %v1812, %v1809
  %v1815 = vmul.f32 %v1789, %v1813
  %v1816 = vsub.f32 1.0, %v1748
  %1818 = vset.pattern.permute.xlu0 0
  %1819 = vperm.xlu0 %1818, %v1816
  %v1820 = vpop.permute.xlu0 %1819
  %v1822 = vmul.f32 %v1820, %v1655
  %v1823 = vadd.f32 %v1815, %v1822
  %1825 = vset.pattern.permute.xlu0 0
  %1826 = vperm.xlu0 %1825, %v1751
  %v1827 = vpop.permute.xlu0 %1826
  %v1829 = vmul.f32 %v1827, %v777
  %v1830 = vadd.f32 %v1823, %v1829
  %v1832 = vrot.slane %v1830, 1
  %v1833 = vperm.slane %v1830, 0
  %v1834 = vperm.slane %v1832, 0
  %v1837 = vadd.f32 %v1833, %v28
  %v1838 = vadd.f32 %v1833, %v29
  %v1839 = vadd.f32 %v1834, %v28
  %v1840 = vadd.f32 %v1834, %v29
  %v1841 = vsel %vm676, %v1837, -inf
  %1842 = vmax.xlane.f32.xlu0 %v1841
  %v1843 = vpop.xlane.xlu0 %1842
  %v1844 = vsel %vm680, %v1838, -inf
  %1845 = vmax.xlane.f32.xlu0 %v1844
  %v1846 = vpop.xlane.xlu0 %1845
  %v1847 = vsel %vm676, %v1839, -inf
  %1848 = vmax.xlane.f32.xlu0 %v1847
  %v1849 = vpop.xlane.xlu0 %1848
  %v1850 = vsel %vm680, %v1840, -inf
  %1851 = vmax.xlane.f32.xlu0 %v1850
  %v1852 = vpop.xlane.xlu0 %1851
  %vm1853 = vcmp.eq.f32.partialorder %v1837, %v1843
  %vm1854 = vcmp.eq.f32.partialorder %v1838, %v1846
  %vm1855 = vcmp.eq.f32.partialorder %v1839, %v1849
  %vm1856 = vcmp.eq.f32.partialorder %v1840, %v1852
  %v1857 = vsel %vm1853, %v663, 10
  %v1858 = vsel %vm1854, %v663, 10
  %v1859 = vsel %vm1855, %v663, 10
  %v1860 = vsel %vm1856, %v663, 10
  %v1861 = vsel %vm676, %v1857, 2147483647
  %v1862 = vand.u32 %v1861, 65535
  %v1863 = vshra.s32 %v1861, 16
  %v1864 = vcvt.s32.f32 %v1862
  %v1865 = vcvt.s32.f32 %v1863
  %1866 = vmin.xlane.f32.xlu0 %v1865
  %v1867 = vpop.xlane.xlu0 %1866
  %vm1868 = vcmp.eq.f32.partialorder %v1865, %v1867
  %v1869 = vsel %vm1868, %v1864, inf
  %1870 = vmin.xlane.f32.xlu0 %v1869
  %v1871 = vpop.xlane.xlu0 %1870
  %v1872 = vcvt.f32.s32 %v1871
  %v1873 = vcvt.f32.s32 %v1867
  %v1874 = vshll.u32 %v1873, 16
  %v1875 = vadd.s32 %v1874, %v1872
  %v1876 = vsel %vm680, %v1858, 2147483647
  %v1877 = vand.u32 %v1876, 65535
  %v1878 = vshra.s32 %v1876, 16
  %v1879 = vcvt.s32.f32 %v1877
  %v1880 = vcvt.s32.f32 %v1878
  %1881 = vmin.xlane.f32.xlu0 %v1880
  %v1882 = vpop.xlane.xlu0 %1881
  %vm1883 = vcmp.eq.f32.partialorder %v1880, %v1882
  %v1884 = vsel %vm1883, %v1879, inf
  %1885 = vmin.xlane.f32.xlu0 %v1884
  %v1886 = vpop.xlane.xlu0 %1885
  %v1887 = vcvt.f32.s32 %v1886
  %v1888 = vcvt.f32.s32 %v1882
  %v1889 = vshll.u32 %v1888, 16
  %v1890 = vadd.s32 %v1889, %v1887
  %v1891 = vsel %vm676, %v1859, 2147483647
  %v1892 = vand.u32 %v1891, 65535
  %v1893 = vshra.s32 %v1891, 16
  %v1894 = vcvt.s32.f32 %v1892
  %v1895 = vcvt.s32.f32 %v1893
  %1896 = vmin.xlane.f32.xlu0 %v1895
  %v1897 = vpop.xlane.xlu0 %1896
  %vm1898 = vcmp.eq.f32.partialorder %v1895, %v1897
  %v1899 = vsel %vm1898, %v1894, inf
  %1900 = vmin.xlane.f32.xlu0 %v1899
  %v1901 = vpop.xlane.xlu0 %1900
  %v1902 = vcvt.f32.s32 %v1901
  %v1903 = vcvt.f32.s32 %v1897
  %v1904 = vshll.u32 %v1903, 16
  %v1905 = vadd.s32 %v1904, %v1902
  %v1906 = vsel %vm680, %v1860, 2147483647
  %v1907 = vand.u32 %v1906, 65535
  %v1908 = vshra.s32 %v1906, 16
  %v1909 = vcvt.s32.f32 %v1907
  %v1910 = vcvt.s32.f32 %v1908
  %1911 = vmin.xlane.f32.xlu0 %v1910
  %v1912 = vpop.xlane.xlu0 %1911
  %vm1913 = vcmp.eq.f32.partialorder %v1910, %v1912
  %v1914 = vsel %vm1913, %v1909, inf
  %1915 = vmin.xlane.f32.xlu0 %v1914
  %v1916 = vpop.xlane.xlu0 %1915
  %v1917 = vcvt.f32.s32 %v1916
  %v1918 = vcvt.f32.s32 %v1912
  %v1919 = vshll.u32 %v1918, 16
  %v1920 = vadd.s32 %v1919, %v1917
  %vm1921 = vcmp.gt.s32.totalorder %v661, 7
  %v1922 = vsel %vm1921, 1, 0
  %v1923 = vcvt.s32.f32 %v1922
  %vm1924 = vcmp.eq.s32.totalorder %v661, 8
  %v1925 = vsel %vm1924, 1, 0
  %v1926 = vcvt.s32.f32 %v1925
  %v1927 = vperm.slane %v659, 6
  %v1928 = vlaneseq
  %v1929 = vshrl.u32 %v1928, 7
  %1931 = vset.pattern.permute.xlu0 %v1929
  %1932 = vperm.xlu0 %1931, %v1927
  %v1933 = vpop.permute.xlu0 %1932
  %v1934 = vlaneseq
  %v1935 = vshrl.u32 %v1934, 7
  %v1936 = vadd.s32 %v1935, 8
  %1937 = vset.pattern.permute.xlu0 %v1936
  %1938 = vperm.xlu0 %1937, %v1927
  %v1939 = vpop.permute.xlu0 %1938
  %v1940 = vperm.slane %v659, 7
  %v1941 = vlaneseq
  %v1942 = vshrl.u32 %v1941, 7
  %1944 = vset.pattern.permute.xlu0 %v1942
  %1945 = vperm.xlu0 %1944, %v1940
  %v1946 = vpop.permute.xlu0 %1945
  %v1947 = vlaneseq
  %v1948 = vshrl.u32 %v1947, 7
  %v1949 = vadd.s32 %v1948, 8
  %1950 = vset.pattern.permute.xlu0 %v1949
  %1951 = vperm.xlu0 %1950, %v1940
  %v1952 = vpop.permute.xlu0 %1951
  %v1957 = vadd.f32 %v1843, %v1933
  %v1958 = vadd.f32 %v1846, %v1939
  %v1959 = vadd.f32 %v1849, %v1946
  %v1960 = vadd.f32 %v1852, %v1952
  %1962 = vset.pattern.permute.xlu0 0
  %1963 = vperm.xlu0 %1962, %v1923
  %v1964 = vpop.permute.xlu0 %1963
  %1970 = vset.pattern.permute.xlu0 0
  %1971 = vperm.xlu0 %1970, %v1957
  %v1972 = vpop.permute.xlu0 %1971
  %1973 = vset.pattern.permute.xlu0 0
  %1974 = vperm.xlu0 %1973, %v1958
  %v1975 = vpop.permute.xlu0 %1974
  %1976 = vset.pattern.permute.xlu0 0
  %1977 = vperm.xlu0 %1976, %v1959
  %v1978 = vpop.permute.xlu0 %1977
  %1979 = vset.pattern.permute.xlu0 0
  %1980 = vperm.xlu0 %1979, %v1960
  %v1981 = vpop.permute.xlu0 %1980
  %v1982 = vperm.slane %v1972, %v663
  %v1983 = vperm.slane %v1975, %v753
  %v1984 = vsel %vm755, %v1983, %v1982
  %v1985 = vperm.slane %v1978, %v663
  %v1986 = vperm.slane %v1981, %v753
  %v1987 = vsel %vm755, %v1986, %v1985
  %v1988 = vsel %vm760, %v1987, %v1984
  %v1990 = vmul.f32 %v1964, %v1988
  %v1991 = vsub.f32 1.0, %v1923
  %1993 = vset.pattern.permute.xlu0 0
  %1994 = vperm.xlu0 %1993, %v1991
  %v1995 = vpop.permute.xlu0 %1994
  %v1997 = vmul.f32 %v1995, %v1830
  %v1998 = vadd.f32 %v1990, %v1997
  %2000 = vset.pattern.permute.xlu0 0
  %2001 = vperm.xlu0 %2000, %v1926
  %v2002 = vpop.permute.xlu0 %2001
  %v2004 = vmul.f32 %v2002, %v777
  %v2005 = vadd.f32 %v1998, %v2004
  %v2006 = vsel %vm680, %v2005, -inf
  %2007 = vmax.xlane.f32.xlu0 %v2006
  %v2008 = vpop.xlane.xlu0 %2007
  %vm2009 = vcmp.eq.f32.partialorder %v2005, %v2008
  %v2010 = vsel %vm2009, %v663, 10
  %v2011 = vsel %vm680, %v2010, 2147483647
  %v2012 = vand.u32 %v2011, 65535
  %v2013 = vshra.s32 %v2011, 16
  %v2014 = vcvt.s32.f32 %v2012
  %v2015 = vcvt.s32.f32 %v2013
  %2016 = vmin.xlane.f32.xlu0 %v2015
  %v2017 = vpop.xlane.xlu0 %2016
  %vm2018 = vcmp.eq.f32.partialorder %v2015, %v2017
  %v2019 = vsel %vm2018, %v2014, inf
  %2020 = vmin.xlane.f32.xlu0 %v2019
  %v2021 = vpop.xlane.xlu0 %2020
  %v2022 = vcvt.f32.s32 %v2021
  %v2023 = vcvt.f32.s32 %v2017
  %v2024 = vshll.u32 %v2023, 16
  %v2025 = vadd.s32 %v2024, %v2022
  %vm2026 = vcmp.eq.s32.totalorder %v663, %v2025
  %v2027 = vperm.slane %v1875, %v663
  %v2028 = vperm.slane %v1890, %v753
  %v2029 = vsel %vm755, %v2028, %v2027
  %v2030 = vperm.slane %v1905, %v663
  %v2031 = vperm.slane %v1920, %v753
  %v2032 = vsel %vm755, %v2031, %v2030
  %v2033 = vsel %vm760, %v2032, %v2029
  %v2034 = vsel %vm2026, %v2033, 10
  %v2035 = vsel %vm680, %v2034, 2147483647
  %v2036 = vand.u32 %v2035, 65535
  %v2037 = vshra.s32 %v2035, 16
  %v2038 = vcvt.s32.f32 %v2036
  %v2039 = vcvt.s32.f32 %v2037
  %2040 = vmin.xlane.f32.xlu0 %v2039
  %v2041 = vpop.xlane.xlu0 %2040
  %vm2042 = vcmp.eq.f32.partialorder %v2039, %v2041
  %v2043 = vsel %vm2042, %v2038, inf
  %2044 = vmin.xlane.f32.xlu0 %v2043
  %v2045 = vpop.xlane.xlu0 %2044
  %v2046 = vcvt.f32.s32 %v2045
  %v2047 = vcvt.f32.s32 %v2041
  %v2048 = vshll.u32 %v2047, 16
  %v2049 = vadd.s32 %v2048, %v2046
  %vm2050 = vcmp.eq.s32.totalorder %v663, %v2049
  %v2051 = vperm.slane %v1700, %v663
  %v2052 = vperm.slane %v1715, %v753
  %v2053 = vsel %vm755, %v2052, %v2051
  %v2054 = vperm.slane %v1730, %v663
  %v2055 = vperm.slane %v1745, %v753
  %v2056 = vsel %vm755, %v2055, %v2054
  %v2057 = vsel %vm760, %v2056, %v2053
  %v2058 = vsel %vm2050, %v2057, 10
  %v2059 = vsel %vm680, %v2058, 2147483647
  %v2060 = vand.u32 %v2059, 65535
  %v2061 = vshra.s32 %v2059, 16
  %v2062 = vcvt.s32.f32 %v2060
  %v2063 = vcvt.s32.f32 %v2061
  %2064 = vmin.xlane.f32.xlu0 %v2063
  %v2065 = vpop.xlane.xlu0 %2064
  %vm2066 = vcmp.eq.f32.partialorder %v2063, %v2065
  %v2067 = vsel %vm2066, %v2062, inf
  %2068 = vmin.xlane.f32.xlu0 %v2067
  %v2069 = vpop.xlane.xlu0 %2068
  %v2070 = vcvt.f32.s32 %v2069
  %v2071 = vcvt.f32.s32 %v2065
  %v2072 = vshll.u32 %v2071, 16
  %v2073 = vadd.s32 %v2072, %v2070
  %vm2074 = vcmp.eq.s32.totalorder %v663, %v2073
  %v2075 = vperm.slane %v1525, %v663
  %v2076 = vperm.slane %v1540, %v753
  %v2077 = vsel %vm755, %v2076, %v2075
  %v2078 = vperm.slane %v1555, %v663
  %v2079 = vperm.slane %v1570, %v753
  %v2080 = vsel %vm755, %v2079, %v2078
  %v2081 = vsel %vm760, %v2080, %v2077
  %v2082 = vsel %vm2074, %v2081, 10
  %v2083 = vsel %vm680, %v2082, 2147483647
  %v2084 = vand.u32 %v2083, 65535
  %v2085 = vshra.s32 %v2083, 16
  %v2086 = vcvt.s32.f32 %v2084
  %v2087 = vcvt.s32.f32 %v2085
  %2088 = vmin.xlane.f32.xlu0 %v2087
  %v2089 = vpop.xlane.xlu0 %2088
  %vm2090 = vcmp.eq.f32.partialorder %v2087, %v2089
  %v2091 = vsel %vm2090, %v2086, inf
  %2092 = vmin.xlane.f32.xlu0 %v2091
  %v2093 = vpop.xlane.xlu0 %2092
  %v2094 = vcvt.f32.s32 %v2093
  %v2095 = vcvt.f32.s32 %v2089
  %v2096 = vshll.u32 %v2095, 16
  %v2097 = vadd.s32 %v2096, %v2094
  %vm2098 = vcmp.eq.s32.totalorder %v663, %v2097
  %v2099 = vperm.slane %v1349, %v663
  %v2100 = vperm.slane %v1364, %v753
  %v2101 = vsel %vm755, %v2100, %v2099
  %v2102 = vperm.slane %v1379, %v663
  %v2103 = vperm.slane %v1394, %v753
  %v2104 = vsel %vm755, %v2103, %v2102
  %v2105 = vsel %vm760, %v2104, %v2101
  %v2106 = vsel %vm2098, %v2105, 10
  %v2107 = vsel %vm680, %v2106, 2147483647
  %v2108 = vand.u32 %v2107, 65535
  %v2109 = vshra.s32 %v2107, 16
  %v2110 = vcvt.s32.f32 %v2108
  %v2111 = vcvt.s32.f32 %v2109
  %2112 = vmin.xlane.f32.xlu0 %v2111
  %v2113 = vpop.xlane.xlu0 %2112
  %vm2114 = vcmp.eq.f32.partialorder %v2111, %v2113
  %v2115 = vsel %vm2114, %v2110, inf
  %2116 = vmin.xlane.f32.xlu0 %v2115
  %v2117 = vpop.xlane.xlu0 %2116
  %v2118 = vcvt.f32.s32 %v2117
  %v2119 = vcvt.f32.s32 %v2113
  %v2120 = vshll.u32 %v2119, 16
  %v2121 = vadd.s32 %v2120, %v2118
  %vm2122 = vcmp.eq.s32.totalorder %v663, %v2121
  %v2123 = vperm.slane %v1174, %v663
  %v2124 = vperm.slane %v1189, %v753
  %v2125 = vsel %vm755, %v2124, %v2123
  %v2126 = vperm.slane %v1204, %v663
  %v2127 = vperm.slane %v1219, %v753
  %v2128 = vsel %vm755, %v2127, %v2126
  %v2129 = vsel %vm760, %v2128, %v2125
  %v2130 = vsel %vm2122, %v2129, 10
  %v2131 = vsel %vm680, %v2130, 2147483647
  %v2132 = vand.u32 %v2131, 65535
  %v2133 = vshra.s32 %v2131, 16
  %v2134 = vcvt.s32.f32 %v2132
  %v2135 = vcvt.s32.f32 %v2133
  %2136 = vmin.xlane.f32.xlu0 %v2135
  %v2137 = vpop.xlane.xlu0 %2136
  %vm2138 = vcmp.eq.f32.partialorder %v2135, %v2137
  %v2139 = vsel %vm2138, %v2134, inf
  %2140 = vmin.xlane.f32.xlu0 %v2139
  %v2141 = vpop.xlane.xlu0 %2140
  %v2142 = vcvt.f32.s32 %v2141
  %v2143 = vcvt.f32.s32 %v2137
  %v2144 = vshll.u32 %v2143, 16
  %v2145 = vadd.s32 %v2144, %v2142
  %vm2146 = vcmp.eq.s32.totalorder %v663, %v2145
  %v2147 = vperm.slane %v999, %v663
  %v2148 = vperm.slane %v1014, %v753
  %v2149 = vsel %vm755, %v2148, %v2147
  %v2150 = vperm.slane %v1029, %v663
  %v2151 = vperm.slane %v1044, %v753
  %v2152 = vsel %vm755, %v2151, %v2150
  %v2153 = vsel %vm760, %v2152, %v2149
  %v2154 = vsel %vm2146, %v2153, 10
  %v2155 = vsel %vm680, %v2154, 2147483647
  %v2156 = vand.u32 %v2155, 65535
  %v2157 = vshra.s32 %v2155, 16
  %v2158 = vcvt.s32.f32 %v2156
  %v2159 = vcvt.s32.f32 %v2157
  %2160 = vmin.xlane.f32.xlu0 %v2159
  %v2161 = vpop.xlane.xlu0 %2160
  %vm2162 = vcmp.eq.f32.partialorder %v2159, %v2161
  %v2163 = vsel %vm2162, %v2158, inf
  %2164 = vmin.xlane.f32.xlu0 %v2163
  %v2165 = vpop.xlane.xlu0 %2164
  %v2166 = vcvt.f32.s32 %v2165
  %v2167 = vcvt.f32.s32 %v2161
  %v2168 = vshll.u32 %v2167, 16
  %v2169 = vadd.s32 %v2168, %v2166
  %vm2170 = vcmp.eq.s32.totalorder %v663, %v2169
  %v2171 = vperm.slane %v824, %v663
  %v2172 = vperm.slane %v839, %v753
  %v2173 = vsel %vm755, %v2172, %v2171
  %v2174 = vperm.slane %v854, %v663
  %v2175 = vperm.slane %v869, %v753
  %v2176 = vsel %vm755, %v2175, %v2174
  %v2177 = vsel %vm760, %v2176, %v2173
  %v2178 = vsel %vm2170, %v2177, 10
  %v2179 = vsel %vm680, %v2178, 2147483647
  %v2180 = vand.u32 %v2179, 65535
  %v2181 = vshra.s32 %v2179, 16
  %v2182 = vcvt.s32.f32 %v2180
  %v2183 = vcvt.s32.f32 %v2181
  %2184 = vmin.xlane.f32.xlu0 %v2183
  %v2185 = vpop.xlane.xlu0 %2184
  %vm2186 = vcmp.eq.f32.partialorder %v2183, %v2185
  %v2187 = vsel %vm2186, %v2182, inf
  %2188 = vmin.xlane.f32.xlu0 %v2187
  %v2189 = vpop.xlane.xlu0 %2188
  %v2190 = vcvt.f32.s32 %v2189
  %v2191 = vcvt.f32.s32 %v2185
  %v2192 = vshll.u32 %v2191, 16
  %v2193 = vadd.s32 %v2192, %v2190
  %vm2194 = vcmp.eq.s32.totalorder %v663, 0
  %v2195 = vsel %vm2194, %v2193, 0
  %vm2196 = vcmp.eq.s32.totalorder %v663, 1
  %v2197 = vsel %vm2196, %v2169, %v2195
  %vm2198 = vcmp.eq.s32.totalorder %v663, 2
  %v2199 = vsel %vm2198, %v2145, %v2197
  %vm2200 = vcmp.eq.s32.totalorder %v663, 3
  %v2201 = vsel %vm2200, %v2121, %v2199
  %vm2202 = vcmp.eq.s32.totalorder %v663, 4
  %v2203 = vsel %vm2202, %v2097, %v2201
  %vm2204 = vcmp.eq.s32.totalorder %v663, 5
  %v2205 = vsel %vm2204, %v2073, %v2203
  %vm2206 = vcmp.eq.s32.totalorder %v663, 6
  %v2207 = vsel %vm2206, %v2049, %v2205
  %vm2208 = vcmp.eq.s32.totalorder %v663, 7
  %v2209 = vsel %vm2208, %v2025, %v2207
  %2210 = vst [vmem:[%s3] sm:$0x3] %v2209
  // Predicated region
  $region14: #{forward.1} parent=0 // pred_check
    _
  $region15: #{forward.1} parent=0 // pred_check_branch
    %2212 = sbr.rel (0) target = $region17
  $region16: #{forward.1} parent=0 // pred_region
    _
  $region17: #{forward.1} parent=0 // pred_fallthru
    _
  // Predicated region
  $region18: #{forward.1} parent=0 // pred_check
    _
  $region19: #{forward.1} parent=0 // pred_check_branch
    %2214 = sbr.rel (0) target = $region21
  $region20: #{forward.1} parent=0 // pred_region
    _
  $region21: #{forward.1} parent=0 // pred_fallthru
    _

</llo_original>
